<compile_context>
chip_gen: v5e
topology: v5e:2x2
jax: 0.10.0
libtpu: 0.0.40
codegen_flags: <defaults>
</compile_context>

<pallas_src>
import math

import jax
import jax.numpy as jnp
from jax import lax
from jax.experimental import pallas as pl
from jax.experimental.pallas import tpu as pltpu

# conv hyper-params from FCN.__init__ (padding = dil*(K-1)/2 -> "same" length)
K1, K2, K3 = 7, 5, 3
D1, D2, D3 = 2, 4, 8
P1, P2, P3 = 6, 8, 8
C1, C2, C3 = 128, 256, 128
CIM = 128                     # lane-padded im2col width for layer 1 (K1*n_in <= 128)
EPS = 1e-5
ACT_DT = jnp.bfloat16         # MXU-operand / inter-layer scratch dtype
                              # TODO(synk): consider f32 scratch on v5e if the
                              # value-level sublane shifts become the bottleneck.


def _bn_affine(s, q, n, gamma, beta):
    """Per-channel BN scale/shift from batch sums (train-mode biased variance)."""
    mean = s * (1.0 / n)
    var = jnp.maximum(q * (1.0 / n) - mean * mean, 0.0)
    scale = gamma * lax.rsqrt(var + EPS)
    shift = beta - mean * scale
    return scale, shift


def _make_fcn_kernel(B, L, BG):
    nB = B // BG              # number of batch-group chunks (BG divides B)
    ROWS = BG * L             # matmul M dimension per chunk
    unroll = nB <= 8

    def taps(y, pad, k_taps, dil):
        """im2col in lanes: (BG, L, Cin) -> (ROWS, k_taps*Cin), zero padded."""
        cin = y.shape[-1]
        z = jnp.zeros((BG, pad, cin), y.dtype)
        yp = jnp.concatenate([z, y, z], axis=1)                  # (BG, L+2*pad, Cin)
        cols = [yp[:, k * dil:k * dil + L, :] for k in range(k_taps)]
        return jnp.concatenate(cols, axis=-1).reshape(ROWS, k_taps * cin)

    def kernel(xim_ref,
               w1_ref, b1_ref, g1_ref, bt1_ref,
               w2_ref, b2_ref, g2_ref, bt2_ref,
               w3_ref, b3_ref, g3_ref, bt3_ref,
               lw1_ref, lb1_ref, lg_ref, lbt_ref,
               lw2_ref, lb2_ref,
               oh_ref,
               pa1_ref, pa2_ref, hbuf_ref):
        f32 = jnp.float32
        n_conv = float(B * L)

        # ---- layer 1: Conv1d(n_in,128,k=7,p=6,d=2) pre-activations + stats --
        # layer-1 im2col (K1*n_in packed into 128 lanes) was done in the wrapper.
        def l1_body(i, carry):
            s, q = carry
            b0 = pl.multiple_of(i * BG, BG)
            x = xim_ref[pl.ds(b0, BG), :, :].reshape(ROWS, CIM)
            z = jnp.dot(x, w1_ref[...], preferred_element_type=f32) + b1_ref[...]
            pa1_ref[pl.ds(b0, BG), :, :] = z.reshape(BG, L, C1).astype(ACT_DT)
            return (s + jnp.sum(z, axis=0, keepdims=True),
                    q + jnp.sum(z * z, axis=0, keepdims=True))
        s1, q1 = lax.fori_loop(0, nB, l1_body,
                               (jnp.zeros((1, C1), f32), jnp.zeros((1, C1), f32)),
                               unroll=unroll)
        sc1, sh1 = _bn_affine(s1, q1, n_conv, g1_ref[...], bt1_ref[...])

        # ---- layer 2: BN1+ReLU fused into Conv1d(128,256,k=5,p=8,d=4) -------
        # taps folded into the contraction: one (ROWS,640)x(640,256) matmul.
        def l2_body(i, carry):
            s, q = carry
            b0 = pl.multiple_of(i * BG, BG)
            z1 = pa1_ref[pl.ds(b0, BG), :, :].astype(f32)
            y1 = jnp.maximum(z1 * sc1 + sh1, 0.0).astype(ACT_DT)
            x2 = taps(y1, P2, K2, D2)                            # (ROWS, 640)
            z = jnp.dot(x2, w2_ref[...], preferred_element_type=f32) + b2_ref[...]
            pa2_ref[pl.ds(b0, BG), :, :] = z.reshape(BG, L, C2).astype(ACT_DT)
            return (s + jnp.sum(z, axis=0, keepdims=True),
                    q + jnp.sum(z * z, axis=0, keepdims=True))
        s2, q2 = lax.fori_loop(0, nB, l2_body,
                               (jnp.zeros((1, C2), f32), jnp.zeros((1, C2), f32)),
                               unroll=unroll)
        sc2, sh2 = _bn_affine(s2, q2, n_conv, g2_ref[...], bt2_ref[...])

        # ---- layer 3: BN2+ReLU fused into Conv1d(256,128,k=3,p=8,d=8) -------
        # layer-3 pre-activations reuse pa1 (same (B, L, 128) shape).
        def l3_body(i, carry):
            s, q = carry
            b0 = pl.multiple_of(i * BG, BG)
            z2 = pa2_ref[pl.ds(b0, BG), :, :].astype(f32)
            y2 = jnp.maximum(z2 * sc2 + sh2, 0.0).astype(ACT_DT)
            x3 = taps(y2, P3, K3, D3)                            # (ROWS, 768)
            z = jnp.dot(x3, w3_ref[...], preferred_element_type=f32) + b3_ref[...]
            pa1_ref[pl.ds(b0, BG), :, :] = z.reshape(BG, L, C3).astype(ACT_DT)
            return (s + jnp.sum(z, axis=0, keepdims=True),
                    q + jnp.sum(z * z, axis=0, keepdims=True))
        s3, q3 = lax.fori_loop(0, nB, l3_body,
                               (jnp.zeros((1, C3), f32), jnp.zeros((1, C3), f32)),
                               unroll=unroll)
        sc3, sh3 = _bn_affine(s3, q3, n_conv, g3_ref[...], bt3_ref[...])

        # ---- BN3 + ReLU + AdaptiveAvgPool1d(1) + Flatten -> h (B, 128) ------
        def pool_body(i, carry):
            b0 = pl.multiple_of(i * BG, BG)
            z3 = pa1_ref[pl.ds(b0, BG), :, :].astype(f32)
            y3 = jnp.maximum(z3 * sc3 + sh3, 0.0)
            hbuf_ref[pl.ds(b0, BG), :] = jnp.mean(y3, axis=1)
            return carry
        lax.fori_loop(0, nB, pool_body, 0, unroll=unroll)

        # ---- proj head: Linear(128,128) + BN1d + ReLU + Linear(128,128) -----
        h = hbuf_ref[...]
        z = jnp.dot(h, lw1_ref[...], preferred_element_type=f32) + lb1_ref[...]
        mean = jnp.mean(z, axis=0, keepdims=True)
        d = z - mean
        var = jnp.mean(d * d, axis=0, keepdims=True)
        z = jnp.maximum(d * (lg_ref[...] * lax.rsqrt(var + EPS)) + lbt_ref[...], 0.0)
        out = jnp.dot(z, lw2_ref[...], preferred_element_type=f32) + lb2_ref[...]
        # single lane-dense store: cols [0:128) = proj output, [128:256) = h
        oh_ref[...] = jnp.concatenate([out, h], axis=-1)

    return kernel


def _prep_params(params):
    """Cast matmul weights to bf16; fold conv taps into the contraction dim."""
    (w1, b1, g1, bt1, w2, b2, g2, bt2, w3, b3, g3, bt3,
     lw1, lb1, lg, lbt, lw2, lb2) = params
    kn = w1.shape[0] * w1.shape[1]                  # K1 * n_in
    w1_im = jnp.pad(w1.reshape(kn, C1), ((0, CIM - kn), (0, 0))).astype(ACT_DT)
    w2_im = w2.reshape(K2 * C1, C2).astype(ACT_DT)  # (640, 256)
    w3_im = w3.reshape(K3 * C2, C3).astype(ACT_DT)  # (768, 128)
    return (w1_im, b1, g1, bt1, w2_im, b2, g2, bt2, w3_im, b3, g3, bt3,
            lw1, lb1, lg, lbt, lw2, lb2)


def fcn_forward(x, params, *, rows_per_chunk=1024):
    """x: (B, n_in, L) float32 — same NCL convention as the PyTorch module."""
    B, n_in, L = x.shape
    assert K1 * n_in <= CIM, "layer-1 im2col packing requires K1 * n_in <= 128"

    # Glue: NCL -> (B, L, C); zero-pad time by P1; im2col the K1 dilated taps
    # into the lane (channel) dim so conv1 becomes a single lane-dense matmul.
    xt = jnp.transpose(x, (0, 2, 1)).astype(jnp.float32)
    xt = jnp.pad(xt, ((0, 0), (P1, P1), (0, 0)))                 # (B, L+12, n_in)
    xim = jnp.concatenate([xt[:, k * D1:k * D1 + L, :] for k in range(K1)],
                          axis=-1)                               # (B, L, K1*n_in)
    xim = jnp.pad(xim, ((0, 0), (0, 0), (0, CIM - K1 * n_in))).astype(ACT_DT)

    kparams = _prep_params(params)

    # Batch-group chunk size: largest divisor of B with BG*L <= rows_per_chunk,
    # so the f32 conv accumulator / normalized-activation temporaries stay a
    # few MiB regardless of B*L.
    bg_cap = max(1, min(B, rows_per_chunk // max(L, 1)))
    BG = 1
    for c in range(bg_cap, 0, -1):
        if B % c == 0:
            BG = c
            break

    kernel = _make_fcn_kernel(B, L, BG)
    vmem = pl.BlockSpec(memory_space=pltpu.MemorySpace.VMEM)

    out_shape = jax.ShapeDtypeStruct((B, 2 * C3), jnp.float32)   # [out | h] slab
    scratch = [
        pltpu.VMEM((B, L, C1), ACT_DT),      # layer-1 (then layer-3) pre-activations
        pltpu.VMEM((B, L, C2), ACT_DT),      # layer-2 pre-activations
        pltpu.VMEM((B, C3), jnp.float32),    # pooled feature h
    ]

    # --- VMEM budget: resident refs + per-chunk f32/bf16 temporaries ---------
    def nbytes(shape, dt):
        return math.prod(shape) * jnp.dtype(dt).itemsize

    resident = (nbytes(xim.shape, xim.dtype)
                + sum(nbytes(p.shape, p.dtype) for p in kparams)
                + nbytes(out_shape.shape, out_shape.dtype)
                + B * L * C1 * 2 + B * L * C2 * 2 + B * C3 * 4)
    # per-chunk worst case (layer 2/3): f32 acc + f32 normalized prev act +
    # bf16 im2col operand + bf16 pre-activation tile
    chunk = BG * L * (C2 * 4 + C2 * 4 + K3 * C2 * 2 + C2 * 2)
    footprint = resident + chunk

    try:
        phys = int(pltpu.get_tpu_info().vmem_capacity_bytes)
    except Exception:
        phys = 64 << 20                       # conservative (v7x per-TensorCore)
    cap = max(phys - (8 << 20), 16 << 20)     # leave compiler-internal headroom
    vmem_limit = int(min(max(2 * footprint + (4 << 20), 16 << 20), cap))

    slab = pl.pallas_call(
        kernel,
        out_shape=out_shape,
        in_specs=[vmem] * (1 + len(kparams)),
        out_specs=vmem,
        scratch_shapes=scratch,
        compiler_params=pltpu.CompilerParams(vmem_limit_bytes=vmem_limit),
    )(xim, *kparams)
    return slab[:, :C3], slab[:, C3:]


def init_params(key, n_in):
    """Deterministic synthetic parameters (shapes from FCN.__init__), f32."""
    ks = jax.random.split(key, 10)

    def conv_w(k, K, cin, cout):
        return jax.random.normal(k, (K, cin, cout), jnp.float32) / jnp.sqrt(
            jnp.float32(cin * K))

    w1 = conv_w(ks[0], K1, n_in, C1)                                  # (7, n_in, 128)
    b1 = jax.random.normal(ks[1], (1, C1), jnp.float32) * 0.01
    g1, bt1 = jnp.ones((1, C1), jnp.float32), jnp.zeros((1, C1), jnp.float32)

    w2 = conv_w(ks[2], K2, C1, C2)                                    # (5, 128, 256)
    b2 = jax.random.normal(ks[3], (1, C2), jnp.float32) * 0.01
    g2, bt2 = jnp.ones((1, C2), jnp.float32), jnp.zeros((1, C2), jnp.float32)

    w3 = conv_w(ks[4], K3, C2, C3)                                    # (3, 256, 128)
    b3 = jax.random.normal(ks[5], (1, C3), jnp.float32) * 0.01
    g3, bt3 = jnp.ones((1, C3), jnp.float32), jnp.zeros((1, C3), jnp.float32)

    lw1 = jax.random.normal(ks[6], (128, 128), jnp.float32) / jnp.sqrt(128.0)
    lb1 = jax.random.normal(ks[7], (1, 128), jnp.float32) * 0.01
    lg, lbt = jnp.ones((1, 128), jnp.float32), jnp.zeros((1, 128), jnp.float32)
    lw2 = jax.random.normal(ks[8], (128, 128), jnp.float32) / jnp.sqrt(128.0)
    lb2 = jax.random.normal(ks[9], (1, 128), jnp.float32) * 0.01

    return (w1, b1, g1, bt1, w2, b2, g2, bt2, w3, b3, g3, bt3,
            lw1, lb1, lg, lbt, lw2, lb2)


if __name__ == "__main__":
    key = jax.random.PRNGKey(0)
    kx, kp = jax.random.split(key)
    B, n_in, L = 2, 4, 16
    x = jax.random.normal(kx, (B, n_in, L), jnp.float32)
    params = init_params(kp, n_in)

    out, h = jax.jit(fcn_forward)(x, params)
    jax.block_until_ready((out, h))
    assert out.shape == (B, 128) and h.shape == (B, 128)
    assert bool(jnp.all(jnp.isfinite(out))) and bool(jnp.all(jnp.isfinite(h)))
    print("KERNEL_OK")
</pallas_src>

<mosaic_0001>
module attributes {stable_mosaic.version = 11 : i64} {
  func.func @kernel(%arg0: memref<2x16x128xbf16, #tpu.memory_space<vmem>>, %arg1: memref<128x128xbf16, #tpu.memory_space<vmem>>, %arg2: memref<1x128xf32, #tpu.memory_space<vmem>>, %arg3: memref<1x128xf32, #tpu.memory_space<vmem>>, %arg4: memref<1x128xf32, #tpu.memory_space<vmem>>, %arg5: memref<640x256xbf16, #tpu.memory_space<vmem>>, %arg6: memref<1x256xf32, #tpu.memory_space<vmem>>, %arg7: memref<1x256xf32, #tpu.memory_space<vmem>>, %arg8: memref<1x256xf32, #tpu.memory_space<vmem>>, %arg9: memref<768x128xbf16, #tpu.memory_space<vmem>>, %arg10: memref<1x128xf32, #tpu.memory_space<vmem>>, %arg11: memref<1x128xf32, #tpu.memory_space<vmem>>, %arg12: memref<1x128xf32, #tpu.memory_space<vmem>>, %arg13: memref<128x128xf32, #tpu.memory_space<vmem>>, %arg14: memref<1x128xf32, #tpu.memory_space<vmem>>, %arg15: memref<1x128xf32, #tpu.memory_space<vmem>>, %arg16: memref<1x128xf32, #tpu.memory_space<vmem>>, %arg17: memref<128x128xf32, #tpu.memory_space<vmem>>, %arg18: memref<1x128xf32, #tpu.memory_space<vmem>>, %arg19: memref<2x256xf32, #tpu.memory_space<vmem>>, %arg20: memref<2x16x128xbf16, #tpu.memory_space<vmem>>, %arg21: memref<2x16x256xbf16, #tpu.memory_space<vmem>>, %arg22: memref<2x128xf32, #tpu.memory_space<vmem>>) attributes {dimension_semantics = [], scalar_prefetch = 0 : i64, scratch_operands = 3 : i64, tpu.core_type = #tpu.core_type<tc>} {
    %cst = arith.constant 0.000000e+00 : f32
    %0 = vector.broadcast %cst : f32 to vector<1x128xf32>
    %cst_0 = arith.constant 0.000000e+00 : f32
    %1 = vector.broadcast %cst_0 : f32 to vector<1x128xf32>
    %c0_i32 = arith.constant 0 : i32
    %c2_i32 = arith.constant 2 : i32
    %2 = arith.muli %c0_i32, %c2_i32 : i32
    %3 = tpu.assume_multiple %2, 2 : i32
    %4 = arith.index_cast %3 : i32 to index
    %c0 = arith.constant 0 : index
    %c0_1 = arith.constant 0 : index
    %5 = vector.load %arg0[%4, %c0, %c0_1] : memref<2x16x128xbf16, #tpu.memory_space<vmem>>, vector<2x16x128xbf16>
    %6 = vector.shape_cast %5 : vector<2x16x128xbf16> to vector<32x128xbf16>
    %c0_2 = arith.constant 0 : index
    %c0_3 = arith.constant 0 : index
    %7 = vector.load %arg1[%c0_2, %c0_3] : memref<128x128xbf16, #tpu.memory_space<vmem>>, vector<128x128xbf16>
    %cst_4 = arith.constant dense<0.000000e+00> : vector<32x128xf32>
    %8 = tpu.matmul %6, %7, %cst_4 {dimension_numbers = #tpu.dot_dimension_numbers<[1], [0], [0], [1], [0, 0, 1, 1], [], []>} : vector<32x128xbf16>, vector<128x128xbf16>, vector<32x128xf32> -> vector<32x128xf32>
    %c0_5 = arith.constant 0 : index
    %c0_6 = arith.constant 0 : index
    %9 = vector.load %arg2[%c0_5, %c0_6] : memref<1x128xf32, #tpu.memory_space<vmem>>, vector<1x128xf32>
    %10 = vector.broadcast %9 : vector<1x128xf32> to vector<32x128xf32>
    %11 = arith.addf %8, %10 : vector<32x128xf32>
    %12 = vector.shape_cast %11 : vector<32x128xf32> to vector<2x16x128xf32>
    %13 = arith.truncf %12 : vector<2x16x128xf32> to vector<2x16x128xbf16>
    %14 = arith.index_cast %3 : i32 to index
    %c0_7 = arith.constant 0 : index
    %c0_8 = arith.constant 0 : index
    %15 = vector.load %arg20[%14, %c0_7, %c0_8] : memref<2x16x128xbf16, #tpu.memory_space<vmem>>, vector<2x16x128xbf16>
    tpu.vector_store %arg20[%14, %c0_7, %c0_8], %13 {strides = array<i32>} : memref<2x16x128xbf16, #tpu.memory_space<vmem>>, vector<2x16x128xbf16>,
    %cst_9 = arith.constant dense<0.000000e+00> : vector<128xf32>
    %16 = vector.multi_reduction <add>, %11, %cst_9 [0] : vector<32x128xf32> to vector<128xf32>
    %17 = vector.shape_cast %16 : vector<128xf32> to vector<1x128xf32>
    %18 = arith.addf %0, %17 : vector<1x128xf32>
    %19 = arith.mulf %11, %11 : vector<32x128xf32>
    %cst_10 = arith.constant dense<0.000000e+00> : vector<128xf32>
    %20 = vector.multi_reduction <add>, %19, %cst_10 [0] : vector<32x128xf32> to vector<128xf32>
    %21 = vector.shape_cast %20 : vector<128xf32> to vector<1x128xf32>
    %22 = arith.addf %1, %21 : vector<1x128xf32>
    %c1_i32 = arith.constant 1 : i32
    %c0_11 = arith.constant 0 : index
    %c0_12 = arith.constant 0 : index
    %23 = vector.load %arg3[%c0_11, %c0_12] : memref<1x128xf32, #tpu.memory_space<vmem>>, vector<1x128xf32>
    %c0_13 = arith.constant 0 : index
    %c0_14 = arith.constant 0 : index
    %24 = vector.load %arg4[%c0_13, %c0_14] : memref<1x128xf32, #tpu.memory_space<vmem>>, vector<1x128xf32>
    %cst_15 = arith.constant 3.125000e-02 : f32
    %25 = vector.broadcast %cst_15 : f32 to vector<1x128xf32>
    %26 = arith.mulf %18, %25 : vector<1x128xf32>
    %cst_16 = arith.constant 3.125000e-02 : f32
    %27 = vector.broadcast %cst_16 : f32 to vector<1x128xf32>
    %28 = arith.mulf %22, %27 : vector<1x128xf32>
    %29 = arith.mulf %26, %26 : vector<1x128xf32>
    %30 = arith.subf %28, %29 : vector<1x128xf32>
    %cst_17 = arith.constant 0.000000e+00 : f32
    %31 = vector.broadcast %cst_17 : f32 to vector<1x128xf32>
    %32 = arith.maximumf %30, %31 : vector<1x128xf32>
    %cst_18 = arith.constant 9.99999974E-6 : f32
    %33 = vector.broadcast %cst_18 : f32 to vector<1x128xf32>
    %34 = arith.addf %32, %33 : vector<1x128xf32>
    %35 = math.rsqrt %34 : vector<1x128xf32>
    %36 = arith.mulf %23, %35 : vector<1x128xf32>
    %37 = arith.mulf %26, %36 : vector<1x128xf32>
    %38 = arith.subf %24, %37 : vector<1x128xf32>
    %cst_19 = arith.constant 0.000000e+00 : f32
    %39 = vector.broadcast %cst_19 : f32 to vector<1x256xf32>
    %cst_20 = arith.constant 0.000000e+00 : f32
    %40 = vector.broadcast %cst_20 : f32 to vector<1x256xf32>
    %c0_i32_21 = arith.constant 0 : i32
    %c2_i32_22 = arith.constant 2 : i32
    %41 = arith.muli %c0_i32_21, %c2_i32_22 : i32
    %42 = tpu.assume_multiple %41, 2 : i32
    %43 = arith.index_cast %42 : i32 to index
    %c0_23 = arith.constant 0 : index
    %c0_24 = arith.constant 0 : index
    %44 = vector.load %arg20[%43, %c0_23, %c0_24] : memref<2x16x128xbf16, #tpu.memory_space<vmem>>, vector<2x16x128xbf16>
    %45 = arith.extf %44 : vector<2x16x128xbf16> to vector<2x16x128xf32>
    %46 = vector.shape_cast %36 : vector<1x128xf32> to vector<1x1x128xf32>
    %47 = vector.broadcast %46 : vector<1x1x128xf32> to vector<2x16x128xf32>
    %48 = arith.mulf %45, %47 : vector<2x16x128xf32>
    %49 = vector.shape_cast %38 : vector<1x128xf32> to vector<1x1x128xf32>
    %50 = vector.broadcast %49 : vector<1x1x128xf32> to vector<2x16x128xf32>
    %51 = arith.addf %48, %50 : vector<2x16x128xf32>
    %cst_25 = arith.constant 0.000000e+00 : f32
    %52 = vector.broadcast %cst_25 : f32 to vector<2x16x128xf32>
    %53 = arith.maximumf %51, %52 : vector<2x16x128xf32>
    %54 = arith.truncf %53 : vector<2x16x128xf32> to vector<2x16x128xbf16>
    %cst_26 = arith.constant 0.000000e+00 : bf16
    %55 = vector.broadcast %cst_26 : bf16 to vector<2x8x128xbf16>
    %56 = tpu.concatenate %55, %54, %55 in 1 : vector<2x8x128xbf16>, vector<2x16x128xbf16>, vector<2x8x128xbf16> -> vector<2x32x128xbf16>
    %57 = vector.extract_strided_slice %56 {offsets = [0, 0, 0], sizes = [2, 16, 128], strides = [1, 1, 1]} : vector<2x32x128xbf16> to vector<2x16x128xbf16>
    %58 = vector.extract_strided_slice %56 {offsets = [0, 4, 0], sizes = [2, 16, 128], strides = [1, 1, 1]} : vector<2x32x128xbf16> to vector<2x16x128xbf16>
    %59 = vector.extract_strided_slice %56 {offsets = [0, 8, 0], sizes = [2, 16, 128], strides = [1, 1, 1]} : vector<2x32x128xbf16> to vector<2x16x128xbf16>
    %60 = vector.extract_strided_slice %56 {offsets = [0, 12, 0], sizes = [2, 16, 128], strides = [1, 1, 1]} : vector<2x32x128xbf16> to vector<2x16x128xbf16>
    %61 = vector.extract_strided_slice %56 {offsets = [0, 16, 0], sizes = [2, 16, 128], strides = [1, 1, 1]} : vector<2x32x128xbf16> to vector<2x16x128xbf16>
    %62 = tpu.concatenate %57, %58, %59, %60, %61 in 2 : vector<2x16x128xbf16>, vector<2x16x128xbf16>, vector<2x16x128xbf16>, vector<2x16x128xbf16>, vector<2x16x128xbf16> -> vector<2x16x640xbf16>
    %63 = vector.shape_cast %62 : vector<2x16x640xbf16> to vector<32x640xbf16>
    %c0_27 = arith.constant 0 : index
    %c0_28 = arith.constant 0 : index
    %64 = vector.load %arg5[%c0_27, %c0_28] : memref<640x256xbf16, #tpu.memory_space<vmem>>, vector<640x256xbf16>
    %cst_29 = arith.constant dense<0.000000e+00> : vector<32x256xf32>
    %65 = tpu.matmul %63, %64, %cst_29 {dimension_numbers = #tpu.dot_dimension_numbers<[1], [0], [0], [1], [0, 0, 1, 1], [], []>} : vector<32x640xbf16>, vector<640x256xbf16>, vector<32x256xf32> -> vector<32x256xf32>
    %c0_30 = arith.constant 0 : index
    %c0_31 = arith.constant 0 : index
    %66 = vector.load %arg6[%c0_30, %c0_31] : memref<1x256xf32, #tpu.memory_space<vmem>>, vector<1x256xf32>
    %67 = vector.broadcast %66 : vector<1x256xf32> to vector<32x256xf32>
    %68 = arith.addf %65, %67 : vector<32x256xf32>
    %69 = vector.shape_cast %68 : vector<32x256xf32> to vector<2x16x256xf32>
    %70 = arith.truncf %69 : vector<2x16x256xf32> to vector<2x16x256xbf16>
    %71 = arith.index_cast %42 : i32 to index
    %c0_32 = arith.constant 0 : index
    %c0_33 = arith.constant 0 : index
    %72 = vector.load %arg21[%71, %c0_32, %c0_33] : memref<2x16x256xbf16, #tpu.memory_space<vmem>>, vector<2x16x256xbf16>
    tpu.vector_store %arg21[%71, %c0_32, %c0_33], %70 {strides = array<i32>} : memref<2x16x256xbf16, #tpu.memory_space<vmem>>, vector<2x16x256xbf16>,
    %cst_34 = arith.constant dense<0.000000e+00> : vector<256xf32>
    %73 = vector.multi_reduction <add>, %68, %cst_34 [0] : vector<32x256xf32> to vector<256xf32>
    %74 = vector.shape_cast %73 : vector<256xf32> to vector<1x256xf32>
    %75 = arith.addf %39, %74 : vector<1x256xf32>
    %76 = arith.mulf %68, %68 : vector<32x256xf32>
    %cst_35 = arith.constant dense<0.000000e+00> : vector<256xf32>
    %77 = vector.multi_reduction <add>, %76, %cst_35 [0] : vector<32x256xf32> to vector<256xf32>
    %78 = vector.shape_cast %77 : vector<256xf32> to vector<1x256xf32>
    %79 = arith.addf %40, %78 : vector<1x256xf32>
    %c1_i32_36 = arith.constant 1 : i32
    %c0_37 = arith.constant 0 : index
    %c0_38 = arith.constant 0 : index
    %80 = vector.load %arg7[%c0_37, %c0_38] : memref<1x256xf32, #tpu.memory_space<vmem>>, vector<1x256xf32>
    %c0_39 = arith.constant 0 : index
    %c0_40 = arith.constant 0 : index
    %81 = vector.load %arg8[%c0_39, %c0_40] : memref<1x256xf32, #tpu.memory_space<vmem>>, vector<1x256xf32>
    %cst_41 = arith.constant 3.125000e-02 : f32
    %82 = vector.broadcast %cst_41 : f32 to vector<1x256xf32>
    %83 = arith.mulf %75, %82 : vector<1x256xf32>
    %cst_42 = arith.constant 3.125000e-02 : f32
    %84 = vector.broadcast %cst_42 : f32 to vector<1x256xf32>
    %85 = arith.mulf %79, %84 : vector<1x256xf32>
    %86 = arith.mulf %83, %83 : vector<1x256xf32>
    %87 = arith.subf %85, %86 : vector<1x256xf32>
    %cst_43 = arith.constant 0.000000e+00 : f32
    %88 = vector.broadcast %cst_43 : f32 to vector<1x256xf32>
    %89 = arith.maximumf %87, %88 : vector<1x256xf32>
    %cst_44 = arith.constant 9.99999974E-6 : f32
    %90 = vector.broadcast %cst_44 : f32 to vector<1x256xf32>
    %91 = arith.addf %89, %90 : vector<1x256xf32>
    %92 = math.rsqrt %91 : vector<1x256xf32>
    %93 = arith.mulf %80, %92 : vector<1x256xf32>
    %94 = arith.mulf %83, %93 : vector<1x256xf32>
    %95 = arith.subf %81, %94 : vector<1x256xf32>
    %cst_45 = arith.constant 0.000000e+00 : f32
    %96 = vector.broadcast %cst_45 : f32 to vector<1x128xf32>
    %cst_46 = arith.constant 0.000000e+00 : f32
    %97 = vector.broadcast %cst_46 : f32 to vector<1x128xf32>
    %c0_i32_47 = arith.constant 0 : i32
    %c2_i32_48 = arith.constant 2 : i32
    %98 = arith.muli %c0_i32_47, %c2_i32_48 : i32
    %99 = tpu.assume_multiple %98, 2 : i32
    %100 = arith.index_cast %99 : i32 to index
    %c0_49 = arith.constant 0 : index
    %c0_50 = arith.constant 0 : index
    %101 = vector.load %arg21[%100, %c0_49, %c0_50] : memref<2x16x256xbf16, #tpu.memory_space<vmem>>, vector<2x16x256xbf16>
    %102 = arith.extf %101 : vector<2x16x256xbf16> to vector<2x16x256xf32>
    %103 = vector.shape_cast %93 : vector<1x256xf32> to vector<1x1x256xf32>
    %104 = vector.broadcast %103 : vector<1x1x256xf32> to vector<2x16x256xf32>
    %105 = arith.mulf %102, %104 : vector<2x16x256xf32>
    %106 = vector.shape_cast %95 : vector<1x256xf32> to vector<1x1x256xf32>
    %107 = vector.broadcast %106 : vector<1x1x256xf32> to vector<2x16x256xf32>
    %108 = arith.addf %105, %107 : vector<2x16x256xf32>
    %cst_51 = arith.constant 0.000000e+00 : f32
    %109 = vector.broadcast %cst_51 : f32 to vector<2x16x256xf32>
    %110 = arith.maximumf %108, %109 : vector<2x16x256xf32>
    %111 = arith.truncf %110 : vector<2x16x256xf32> to vector<2x16x256xbf16>
    %cst_52 = arith.constant 0.000000e+00 : bf16
    %112 = vector.broadcast %cst_52 : bf16 to vector<2x8x256xbf16>
    %113 = tpu.concatenate %112, %111, %112 in 1 : vector<2x8x256xbf16>, vector<2x16x256xbf16>, vector<2x8x256xbf16> -> vector<2x32x256xbf16>
    %114 = vector.extract_strided_slice %113 {offsets = [0, 0, 0], sizes = [2, 16, 256], strides = [1, 1, 1]} : vector<2x32x256xbf16> to vector<2x16x256xbf16>
    %115 = vector.extract_strided_slice %113 {offsets = [0, 8, 0], sizes = [2, 16, 256], strides = [1, 1, 1]} : vector<2x32x256xbf16> to vector<2x16x256xbf16>
    %116 = vector.extract_strided_slice %113 {offsets = [0, 16, 0], sizes = [2, 16, 256], strides = [1, 1, 1]} : vector<2x32x256xbf16> to vector<2x16x256xbf16>
    %117 = tpu.concatenate %114, %115, %116 in 2 : vector<2x16x256xbf16>, vector<2x16x256xbf16>, vector<2x16x256xbf16> -> vector<2x16x768xbf16>
    %118 = vector.shape_cast %117 : vector<2x16x768xbf16> to vector<32x768xbf16>
    %c0_53 = arith.constant 0 : index
    %c0_54 = arith.constant 0 : index
    %119 = vector.load %arg9[%c0_53, %c0_54] : memref<768x128xbf16, #tpu.memory_space<vmem>>, vector<768x128xbf16>
    %cst_55 = arith.constant dense<0.000000e+00> : vector<32x128xf32>
    %120 = tpu.matmul %118, %119, %cst_55 {dimension_numbers = #tpu.dot_dimension_numbers<[1], [0], [0], [1], [0, 0, 1, 1], [], []>} : vector<32x768xbf16>, vector<768x128xbf16>, vector<32x128xf32> -> vector<32x128xf32>
    %c0_56 = arith.constant 0 : index
    %c0_57 = arith.constant 0 : index
    %121 = vector.load %arg10[%c0_56, %c0_57] : memref<1x128xf32, #tpu.memory_space<vmem>>, vector<1x128xf32>
    %122 = vector.broadcast %121 : vector<1x128xf32> to vector<32x128xf32>
    %123 = arith.addf %120, %122 : vector<32x128xf32>
    %124 = vector.shape_cast %123 : vector<32x128xf32> to vector<2x16x128xf32>
    %125 = arith.truncf %124 : vector<2x16x128xf32> to vector<2x16x128xbf16>
    %126 = arith.index_cast %99 : i32 to index
    %c0_58 = arith.constant 0 : index
    %c0_59 = arith.constant 0 : index
    %127 = vector.load %arg20[%126, %c0_58, %c0_59] : memref<2x16x128xbf16, #tpu.memory_space<vmem>>, vector<2x16x128xbf16>
    tpu.vector_store %arg20[%126, %c0_58, %c0_59], %125 {strides = array<i32>} : memref<2x16x128xbf16, #tpu.memory_space<vmem>>, vector<2x16x128xbf16>,
    %cst_60 = arith.constant dense<0.000000e+00> : vector<128xf32>
    %128 = vector.multi_reduction <add>, %123, %cst_60 [0] : vector<32x128xf32> to vector<128xf32>
    %129 = vector.shape_cast %128 : vector<128xf32> to vector<1x128xf32>
    %130 = arith.addf %96, %129 : vector<1x128xf32>
    %131 = arith.mulf %123, %123 : vector<32x128xf32>
    %cst_61 = arith.constant dense<0.000000e+00> : vector<128xf32>
    %132 = vector.multi_reduction <add>, %131, %cst_61 [0] : vector<32x128xf32> to vector<128xf32>
    %133 = vector.shape_cast %132 : vector<128xf32> to vector<1x128xf32>
    %134 = arith.addf %97, %133 : vector<1x128xf32>
    %c1_i32_62 = arith.constant 1 : i32
    %c0_63 = arith.constant 0 : index
    %c0_64 = arith.constant 0 : index
    %135 = vector.load %arg11[%c0_63, %c0_64] : memref<1x128xf32, #tpu.memory_space<vmem>>, vector<1x128xf32>
    %c0_65 = arith.constant 0 : index
    %c0_66 = arith.constant 0 : index
    %136 = vector.load %arg12[%c0_65, %c0_66] : memref<1x128xf32, #tpu.memory_space<vmem>>, vector<1x128xf32>
    %cst_67 = arith.constant 3.125000e-02 : f32
    %137 = vector.broadcast %cst_67 : f32 to vector<1x128xf32>
    %138 = arith.mulf %130, %137 : vector<1x128xf32>
    %cst_68 = arith.constant 3.125000e-02 : f32
    %139 = vector.broadcast %cst_68 : f32 to vector<1x128xf32>
    %140 = arith.mulf %134, %139 : vector<1x128xf32>
    %141 = arith.mulf %138, %138 : vector<1x128xf32>
    %142 = arith.subf %140, %141 : vector<1x128xf32>
    %cst_69 = arith.constant 0.000000e+00 : f32
    %143 = vector.broadcast %cst_69 : f32 to vector<1x128xf32>
    %144 = arith.maximumf %142, %143 : vector<1x128xf32>
    %cst_70 = arith.constant 9.99999974E-6 : f32
    %145 = vector.broadcast %cst_70 : f32 to vector<1x128xf32>
    %146 = arith.addf %144, %145 : vector<1x128xf32>
    %147 = math.rsqrt %146 : vector<1x128xf32>
    %148 = arith.mulf %135, %147 : vector<1x128xf32>
    %149 = arith.mulf %138, %148 : vector<1x128xf32>
    %150 = arith.subf %136, %149 : vector<1x128xf32>
    %c0_i32_71 = arith.constant 0 : i32
    %c2_i32_72 = arith.constant 2 : i32
    %151 = arith.muli %c0_i32_71, %c2_i32_72 : i32
    %152 = tpu.assume_multiple %151, 2 : i32
    %153 = arith.index_cast %152 : i32 to index
    %c0_73 = arith.constant 0 : index
    %c0_74 = arith.constant 0 : index
    %154 = vector.load %arg20[%153, %c0_73, %c0_74] : memref<2x16x128xbf16, #tpu.memory_space<vmem>>, vector<2x16x128xbf16>
    %155 = arith.extf %154 : vector<2x16x128xbf16> to vector<2x16x128xf32>
    %156 = vector.shape_cast %148 : vector<1x128xf32> to vector<1x1x128xf32>
    %157 = vector.broadcast %156 : vector<1x1x128xf32> to vector<2x16x128xf32>
    %158 = arith.mulf %155, %157 : vector<2x16x128xf32>
    %159 = vector.shape_cast %150 : vector<1x128xf32> to vector<1x1x128xf32>
    %160 = vector.broadcast %159 : vector<1x1x128xf32> to vector<2x16x128xf32>
    %161 = arith.addf %158, %160 : vector<2x16x128xf32>
    %cst_75 = arith.constant 0.000000e+00 : f32
    %162 = vector.broadcast %cst_75 : f32 to vector<2x16x128xf32>
    %163 = arith.maximumf %161, %162 : vector<2x16x128xf32>
    %cst_76 = arith.constant dense<0.000000e+00> : vector<2x128xf32>
    %164 = vector.multi_reduction <add>, %163, %cst_76 [1] : vector<2x16x128xf32> to vector<2x128xf32>
    %cst_77 = arith.constant 1.600000e+01 : f32
    %165 = vector.broadcast %cst_77 : f32 to vector<2x128xf32>
    %166 = arith.divf %164, %165 : vector<2x128xf32>
    %167 = arith.index_cast %152 : i32 to index
    %c0_78 = arith.constant 0 : index
    %168 = vector.load %arg22[%167, %c0_78] : memref<2x128xf32, #tpu.memory_space<vmem>>, vector<2x128xf32>
    tpu.vector_store %arg22[%167, %c0_78], %166 {strides = array<i32>} : memref<2x128xf32, #tpu.memory_space<vmem>>, vector<2x128xf32>,
    %c1_i32_79 = arith.constant 1 : i32
    %c0_80 = arith.constant 0 : index
    %c0_81 = arith.constant 0 : index
    %169 = vector.load %arg22[%c0_80, %c0_81] : memref<2x128xf32, #tpu.memory_space<vmem>>, vector<2x128xf32>
    %c0_82 = arith.constant 0 : index
    %c0_83 = arith.constant 0 : index
    %170 = vector.load %arg13[%c0_82, %c0_83] : memref<128x128xf32, #tpu.memory_space<vmem>>, vector<128x128xf32>
    %cst_84 = arith.constant dense<0.000000e+00> : vector<2x128xf32>
    %171 = tpu.matmul %169, %170, %cst_84 {dimension_numbers = #tpu.dot_dimension_numbers<[1], [0], [0], [1], [0, 0, 1, 1], [], []>} : vector<2x128xf32>, vector<128x128xf32>, vector<2x128xf32> -> vector<2x128xf32>
    %c0_85 = arith.constant 0 : index
    %c0_86 = arith.constant 0 : index
    %172 = vector.load %arg14[%c0_85, %c0_86] : memref<1x128xf32, #tpu.memory_space<vmem>>, vector<1x128xf32>
    %173 = vector.broadcast %172 : vector<1x128xf32> to vector<2x128xf32>
    %174 = arith.addf %171, %173 : vector<2x128xf32>
    %cst_87 = arith.constant dense<0.000000e+00> : vector<128xf32>
    %175 = vector.multi_reduction <add>, %174, %cst_87 [0] : vector<2x128xf32> to vector<128xf32>
    %176 = vector.shape_cast %175 : vector<128xf32> to vector<1x128xf32>
    %cst_88 = arith.constant 2.000000e+00 : f32
    %177 = vector.broadcast %cst_88 : f32 to vector<1x128xf32>
    %178 = arith.divf %176, %177 : vector<1x128xf32>
    %179 = vector.broadcast %178 : vector<1x128xf32> to vector<2x128xf32>
    %180 = arith.subf %174, %179 : vector<2x128xf32>
    %181 = arith.mulf %180, %180 : vector<2x128xf32>
    %cst_89 = arith.constant dense<0.000000e+00> : vector<128xf32>
    %182 = vector.multi_reduction <add>, %181, %cst_89 [0] : vector<2x128xf32> to vector<128xf32>
    %183 = vector.shape_cast %182 : vector<128xf32> to vector<1x128xf32>
    %cst_90 = arith.constant 2.000000e+00 : f32
    %184 = vector.broadcast %cst_90 : f32 to vector<1x128xf32>
    %185 = arith.divf %183, %184 : vector<1x128xf32>
    %c0_91 = arith.constant 0 : index
    %c0_92 = arith.constant 0 : index
    %186 = vector.load %arg15[%c0_91, %c0_92] : memref<1x128xf32, #tpu.memory_space<vmem>>, vector<1x128xf32>
    %cst_93 = arith.constant 9.99999974E-6 : f32
    %187 = vector.broadcast %cst_93 : f32 to vector<1x128xf32>
    %188 = arith.addf %185, %187 : vector<1x128xf32>
    %189 = math.rsqrt %188 : vector<1x128xf32>
    %190 = arith.mulf %186, %189 : vector<1x128xf32>
    %191 = vector.broadcast %190 : vector<1x128xf32> to vector<2x128xf32>
    %192 = arith.mulf %180, %191 : vector<2x128xf32>
    %c0_94 = arith.constant 0 : index
    %c0_95 = arith.constant 0 : index
    %193 = vector.load %arg16[%c0_94, %c0_95] : memref<1x128xf32, #tpu.memory_space<vmem>>, vector<1x128xf32>
    %194 = vector.broadcast %193 : vector<1x128xf32> to vector<2x128xf32>
    %195 = arith.addf %192, %194 : vector<2x128xf32>
    %cst_96 = arith.constant 0.000000e+00 : f32
    %196 = vector.broadcast %cst_96 : f32 to vector<2x128xf32>
    %197 = arith.maximumf %195, %196 : vector<2x128xf32>
    %c0_97 = arith.constant 0 : index
    %c0_98 = arith.constant 0 : index
    %198 = vector.load %arg17[%c0_97, %c0_98] : memref<128x128xf32, #tpu.memory_space<vmem>>, vector<128x128xf32>
    %cst_99 = arith.constant dense<0.000000e+00> : vector<2x128xf32>
    %199 = tpu.matmul %197, %198, %cst_99 {dimension_numbers = #tpu.dot_dimension_numbers<[1], [0], [0], [1], [0, 0, 1, 1], [], []>} : vector<2x128xf32>, vector<128x128xf32>, vector<2x128xf32> -> vector<2x128xf32>
    %c0_100 = arith.constant 0 : index
    %c0_101 = arith.constant 0 : index
    %200 = vector.load %arg18[%c0_100, %c0_101] : memref<1x128xf32, #tpu.memory_space<vmem>>, vector<1x128xf32>
    %201 = vector.broadcast %200 : vector<1x128xf32> to vector<2x128xf32>
    %202 = arith.addf %199, %201 : vector<2x128xf32>
    %203 = tpu.concatenate %202, %169 in 1 : vector<2x128xf32>, vector<2x128xf32> -> vector<2x256xf32>
    %c0_102 = arith.constant 0 : index
    %c0_103 = arith.constant 0 : index
    %204 = vector.load %arg19[%c0_102, %c0_103] : memref<2x256xf32, #tpu.memory_space<vmem>>, vector<2x256xf32>
    tpu.vector_store %arg19[%c0_102, %c0_103], %203 {strides = array<i32>} : memref<2x256xf32, #tpu.memory_space<vmem>>, vector<2x256xf32>,
    return
  }
}

</mosaic_0001>

<llo_original>
// kernel: fcn_forward.1
$region0: #{fcn_forward.1}
  #allocation0 [shape = 'u32[]', space=smem, size = 0x4, offset = 0x4, fixed_abs, tag = 'smem constant byte address 0x4 - core index']
  #allocation1 [shape = 'u32[72,128]{1,0:T(1,128)}', space=vmem, size = 0x9000, scoped, tag = 'internal scratch']
  #allocation2 [shape = 'bf16[2,16,128]{2,1,0:T(8,128)(2,1)}', space=vmem, size = 0x2000, scoped, tag = 'scratch operand']
  #allocation3 [shape = 'bf16[2,16,256]{2,1,0:T(8,128)(2,1)}', space=vmem, size = 0x4000, scoped, tag = 'scratch operand']
  #allocation4 [shape = 'f32[2,128]{1,0:T(2,128)}', space=vmem, size = 0x400, scoped, tag = 'scratch operand']
  %s0 = inlined_call_operand.vmem [shape: bf16[2,16,128], index: 0, kind: input, shape index: {}]
  %s1 = inlined_call_operand.vmem [shape: bf16[128,128], index: 1, kind: input, shape index: {}]
  %s2 = inlined_call_operand.vmem [shape: f32[1,128], index: 2, kind: input, shape index: {}]
  %s3 = inlined_call_operand.vmem [shape: f32[1,128], index: 3, kind: input, shape index: {}]
  %s4 = inlined_call_operand.vmem [shape: f32[1,128], index: 4, kind: input, shape index: {}]
  %s5 = inlined_call_operand.vmem [shape: bf16[640,256], index: 5, kind: input, shape index: {}]
  %s6 = inlined_call_operand.vmem [shape: f32[1,256], index: 6, kind: input, shape index: {}]
  %s7 = inlined_call_operand.vmem [shape: f32[1,256], index: 7, kind: input, shape index: {}]
  %s8 = inlined_call_operand.vmem [shape: f32[1,256], index: 8, kind: input, shape index: {}]
  %s9 = inlined_call_operand.vmem [shape: bf16[768,128], index: 9, kind: input, shape index: {}]
  %s10 = inlined_call_operand.vmem [shape: f32[1,128], index: 10, kind: input, shape index: {}]
  %s11 = inlined_call_operand.vmem [shape: f32[1,128], index: 11, kind: input, shape index: {}]
  %s12 = inlined_call_operand.vmem [shape: f32[1,128], index: 12, kind: input, shape index: {}]
  %s13 = inlined_call_operand.vmem [shape: f32[128,128], index: 13, kind: input, shape index: {}]
  %s14 = inlined_call_operand.vmem [shape: f32[1,128], index: 14, kind: input, shape index: {}]
  %s15 = inlined_call_operand.vmem [shape: f32[1,128], index: 15, kind: input, shape index: {}]
  %s16 = inlined_call_operand.vmem [shape: f32[1,128], index: 16, kind: input, shape index: {}]
  %s17 = inlined_call_operand.vmem [shape: f32[128,128], index: 17, kind: input, shape index: {}]
  %s18 = inlined_call_operand.vmem [shape: f32[1,128], index: 18, kind: input, shape index: {}]
  %s19 = inlined_call_operand.vmem [shape: f32[2,256], index: 19, kind: output, shape index: {}]
  %s20 = sld [smem:[#allocation0]]
  $region86: #{fcn_forward.1} parent=0
    _
  %s22 = ssub.s32 1, %s20
  %s23 = scalar_select 0, %s22, %s20
  // Predicated region
  $region2: #{fcn_forward.1} parent=0 // pred_check
    _
  $region3: #{fcn_forward.1} parent=0 // pred_check_branch
    %25 = sbr.rel (0) target = $region5
  $region4: #{fcn_forward.1} parent=0 // pred_region
    _
  $region5: #{fcn_forward.1} parent=0 // pred_fallthru
    _
  // Predicated region
  $region6: #{fcn_forward.1} parent=0 // pred_check
    _
  $region7: #{fcn_forward.1} parent=0 // pred_check_branch
    %27 = sbr.rel (0) target = $region9
  $region8: #{fcn_forward.1} parent=0 // pred_region
    _
  $region9: #{fcn_forward.1} parent=0 // pred_fallthru
    _
  // Predicated region
  $region10: #{fcn_forward.1} parent=0 // pred_check
    _
  $region11: #{fcn_forward.1} parent=0 // pred_check_branch
    %29 = sbr.rel (0) target = $region13
  $region12: #{fcn_forward.1} parent=0 // pred_region
    _
  $region13: #{fcn_forward.1} parent=0 // pred_fallthru
    _
  // Predicated region
  $region14: #{fcn_forward.1} parent=0 // pred_check
    _
  $region15: #{fcn_forward.1} parent=0 // pred_check_branch
    %31 = sbr.rel (0) target = $region17
  $region16: #{fcn_forward.1} parent=0 // pred_region
    _
  $region17: #{fcn_forward.1} parent=0 // pred_fallthru
    _
  // Predicated region
  $region18: #{fcn_forward.1} parent=0 // pred_check
    _
  $region19: #{fcn_forward.1} parent=0 // pred_check_branch
    %33 = sbr.rel (0) target = $region21
  $region20: #{fcn_forward.1} parent=0 // pred_region
    _
  $region21: #{fcn_forward.1} parent=0 // pred_fallthru
    _
  // Predicated region
  $region22: #{fcn_forward.1} parent=0 // pred_check
    _
  $region23: #{fcn_forward.1} parent=0 // pred_check_branch
    %35 = sbr.rel (0) target = $region25
  $region24: #{fcn_forward.1} parent=0 // pred_region
    _
  $region25: #{fcn_forward.1} parent=0 // pred_fallthru
    _
  // Predicated region
  $region26: #{fcn_forward.1} parent=0 // pred_check
    _
  $region27: #{fcn_forward.1} parent=0 // pred_check_branch
    %37 = sbr.rel (0) target = $region29
  $region28: #{fcn_forward.1} parent=0 // pred_region
    _
  $region29: #{fcn_forward.1} parent=0 // pred_fallthru
    _
  // Predicated region
  $region30: #{fcn_forward.1} parent=0 // pred_check
    _
  $region31: #{fcn_forward.1} parent=0 // pred_check_branch
    %39 = sbr.rel (0) target = $region33
  $region32: #{fcn_forward.1} parent=0 // pred_region
    _
  $region33: #{fcn_forward.1} parent=0 // pred_fallthru
    _
  // Predicated region
  $region34: #{fcn_forward.1} parent=0 // pred_check
    _
  $region35: #{fcn_forward.1} parent=0 // pred_check_branch
    %41 = sbr.rel (0) target = $region37
  $region36: #{fcn_forward.1} parent=0 // pred_region
    _
  $region37: #{fcn_forward.1} parent=0 // pred_fallthru
    _
  // Predicated region
  $region38: #{fcn_forward.1} parent=0 // pred_check
    _
  $region39: #{fcn_forward.1} parent=0 // pred_check_branch
    %43 = sbr.rel (0) target = $region41
  $region40: #{fcn_forward.1} parent=0 // pred_region
    _
  $region41: #{fcn_forward.1} parent=0 // pred_fallthru
    _
  // Predicated region
  $region42: #{fcn_forward.1} parent=0 // pred_check
    _
  $region43: #{fcn_forward.1} parent=0 // pred_check_branch
    %45 = sbr.rel (0) target = $region45
  $region44: #{fcn_forward.1} parent=0 // pred_region
    _
  $region45: #{fcn_forward.1} parent=0 // pred_fallthru
    _
  // Predicated region
  $region46: #{fcn_forward.1} parent=0 // pred_check
    _
  $region47: #{fcn_forward.1} parent=0 // pred_check_branch
    %47 = sbr.rel (0) target = $region49
  $region48: #{fcn_forward.1} parent=0 // pred_region
    _
  $region49: #{fcn_forward.1} parent=0 // pred_fallthru
    _
  // Predicated region
  $region50: #{fcn_forward.1} parent=0 // pred_check
    _
  $region51: #{fcn_forward.1} parent=0 // pred_check_branch
    %49 = sbr.rel (0) target = $region53
  $region52: #{fcn_forward.1} parent=0 // pred_region
    _
  $region53: #{fcn_forward.1} parent=0 // pred_fallthru
    _
  // Predicated region
  $region54: #{fcn_forward.1} parent=0 // pred_check
    _
  $region55: #{fcn_forward.1} parent=0 // pred_check_branch
    %51 = sbr.rel (0) target = $region57
  $region56: #{fcn_forward.1} parent=0 // pred_region
    _
  $region57: #{fcn_forward.1} parent=0 // pred_fallthru
    _
  // Predicated region
  $region58: #{fcn_forward.1} parent=0 // pred_check
    _
  $region59: #{fcn_forward.1} parent=0 // pred_check_branch
    %53 = sbr.rel (0) target = $region61
  $region60: #{fcn_forward.1} parent=0 // pred_region
    _
  $region61: #{fcn_forward.1} parent=0 // pred_fallthru
    _
  // Predicated region
  $region62: #{fcn_forward.1} parent=0 // pred_check
    _
  $region63: #{fcn_forward.1} parent=0 // pred_check_branch
    %55 = sbr.rel (0) target = $region65
  $region64: #{fcn_forward.1} parent=0 // pred_region
    _
  $region65: #{fcn_forward.1} parent=0 // pred_fallthru
    _
  // Predicated region
  $region66: #{fcn_forward.1} parent=0 // pred_check
    _
  $region67: #{fcn_forward.1} parent=0 // pred_check_branch
    %57 = sbr.rel (0) target = $region69
  $region68: #{fcn_forward.1} parent=0 // pred_region
    _
  $region69: #{fcn_forward.1} parent=0 // pred_fallthru
    _
  // Predicated region
  $region70: #{fcn_forward.1} parent=0 // pred_check
    _
  $region71: #{fcn_forward.1} parent=0 // pred_check_branch
    %59 = sbr.rel (0) target = $region73
  $region72: #{fcn_forward.1} parent=0 // pred_region
    _
  $region73: #{fcn_forward.1} parent=0 // pred_fallthru
    _
  // Predicated region
  $region74: #{fcn_forward.1} parent=0 // pred_check
    _
  $region75: #{fcn_forward.1} parent=0 // pred_check_branch
    %61 = sbr.rel (0) target = $region77
  $region76: #{fcn_forward.1} parent=0 // pred_region
    _
  $region77: #{fcn_forward.1} parent=0 // pred_fallthru
    _
  %s63 = smul.u32 0, 2
  %s64 = smul.addr %s63, 4
  %s65 = scalar_lea.vmem %s0, %s64
  %v66 = vld [vmem:[%s65] sm:$0xf]
  %v67 = vld [vmem:[%s65 + $0x4] sm:$0xf]
  %v68 = vld [vmem:[%s65 + $0x8] sm:$0xf]
  %v69 = vld [vmem:[%s65 + $0xc] sm:$0xf]
  %v70 = vld [vmem:[%s1] sm:$0xf]
  %v71 = vld [vmem:[%s1 + $0x4] sm:$0xf]
  %v72 = vld [vmem:[%s1 + $0x8] sm:$0xf]
  %v73 = vld [vmem:[%s1 + $0xc] sm:$0xf]
  %v74 = vld [vmem:[%s1 + $0x10] sm:$0xf]
  %v75 = vld [vmem:[%s1 + $0x14] sm:$0xf]
  %v76 = vld [vmem:[%s1 + $0x18] sm:$0xf]
  %v77 = vld [vmem:[%s1 + $0x1c] sm:$0xf]
  %v78 = vld [vmem:[%s1 + $0x20] sm:$0xf]
  %v79 = vld [vmem:[%s1 + $0x24] sm:$0xf]
  %v80 = vld [vmem:[%s1 + $0x28] sm:$0xf]
  %v81 = vld [vmem:[%s1 + $0x2c] sm:$0xf]
  %v82 = vld [vmem:[%s1 + $0x30] sm:$0xf]
  %v83 = vld [vmem:[%s1 + $0x34] sm:$0xf]
  %v84 = vld [vmem:[%s1 + $0x38] sm:$0xf]
  %v85 = vld [vmem:[%s1 + $0x3c] sm:$0xf]
  %v86 = vld [vmem:[%s2] sm:$0x1]
  %v88 = vperm.slane %v86, 0
  %v94 = vunpack.c.l.b16 %v66
  %v95 = vunpack.c.l.b16 %v67
  %v96 = vunpack.c.l.b16 %v68
  %v97 = vunpack.c.l.b16 %v69
  %v98 = vpack.c.b16 %v95, %v94
  %v99 = vpack.c.b16 %v97, %v96
  %v118 = vunpack.c.l.b16 %v70
  %v119 = vunpack.c.l.b16 %v71
  %v120 = vunpack.c.l.b16 %v72
  %v121 = vunpack.c.l.b16 %v73
  %v122 = vunpack.c.l.b16 %v74
  %v123 = vunpack.c.l.b16 %v75
  %v124 = vunpack.c.l.b16 %v76
  %v125 = vunpack.c.l.b16 %v77
  %v126 = vunpack.c.l.b16 %v78
  %v127 = vunpack.c.l.b16 %v79
  %v128 = vunpack.c.l.b16 %v80
  %v129 = vunpack.c.l.b16 %v81
  %v130 = vunpack.c.l.b16 %v82
  %v131 = vunpack.c.l.b16 %v83
  %v132 = vunpack.c.l.b16 %v84
  %v133 = vunpack.c.l.b16 %v85
  %v134 = vpack.c.b16 %v119, %v118
  %v135 = vpack.c.b16 %v121, %v120
  %v136 = vpack.c.b16 %v123, %v122
  %v137 = vpack.c.b16 %v125, %v124
  %v138 = vpack.c.b16 %v127, %v126
  %v139 = vpack.c.b16 %v129, %v128
  %v140 = vpack.c.b16 %v131, %v130
  %v141 = vpack.c.b16 %v133, %v132
  %150 = vmatpush.bf16.msra.mxu0 %v141
  %151 = vmatpush.bf16.msra.mxu0 %v140
  %152 = vmatpush.bf16.msra.mxu0 %v139
  %153 = vmatpush.bf16.msra.mxu0 %v138
  %154 = vmatpush.bf16.msra.mxu0 %v137
  %155 = vmatpush.bf16.msra.mxu0 %v136
  %156 = vmatpush.bf16.msra.mxu0 %v135
  %157 = vmatpush.bf16.msra.mxu0 %v134
  %158 = vmatmul.bf16.gmra.mxu0 %v98
  %v159 = vpop.f32.mrf.mxu0
  %v160 = vadd.f32 %v88, %v159
  %v161 = vpop.f32.mrf.mxu0
  %v162 = vadd.f32 %v88, %v161
  %163 = vmatmul.bf16.gmra.mxu0 %v99
  %v164 = vpop.f32.mrf.mxu0
  %v165 = vadd.f32 %v88, %v164
  %v166 = vpop.f32.mrf.mxu0
  %v167 = vadd.f32 %v88, %v166
  %168 = vdwg.mxu0
  %v169 = vpack.c.bf16 %v160, %v160
  %v170 = vpack.c.bf16 %v162, %v162
  %v171 = vpack.c.bf16 %v165, %v165
  %v172 = vpack.c.bf16 %v167, %v167
  %s173 = smul.addr %s63, 4
  %s174 = scalar_lea.vmem [#allocation2], %s173
  %175 = vst [vmem:[%s174] sm:$0xf] %v169
  %176 = vst [vmem:[%s174 + $0x4] sm:$0xf] %v170
  %177 = vst [vmem:[%s174 + $0x8] sm:$0xf] %v171
  %178 = vst [vmem:[%s174 + $0xc] sm:$0xf] %v172
  %v179 = vadd.f32 %v160, %v162
  %v180 = vadd.f32 %v179, %v165
  %v181 = vadd.f32 %v180, %v167
  %v182 = vrot.slane %v181, 4
  %v183 = vadd.f32 %v181, %v182
  %v184 = vrot.slane %v183, 2
  %v185 = vadd.f32 %v183, %v184
  %v186 = vrot.slane %v185, 1
  %v187 = vadd.f32 %v185, %v186
  %v188 = vadd.f32 %v187, 0.0
  %v189 = vmul.f32 %v160, %v160
  %v190 = vmul.f32 %v162, %v162
  %v191 = vmul.f32 %v165, %v165
  %v192 = vmul.f32 %v167, %v167
  %v193 = vadd.f32 %v189, %v190
  %v194 = vadd.f32 %v193, %v191
  %v195 = vadd.f32 %v194, %v192
  %v196 = vrot.slane %v195, 4
  %v197 = vadd.f32 %v195, %v196
  %v198 = vrot.slane %v197, 2
  %v199 = vadd.f32 %v197, %v198
  %v200 = vrot.slane %v199, 1
  %v201 = vadd.f32 %v199, %v200
  %v202 = vadd.f32 %v201, 0.0
  %v203 = vld [vmem:[%s3] sm:$0x1]
  %v204 = vld [vmem:[%s4] sm:$0x1]
  %v205 = vmul.f32 %v188, 0.03125
  %v206 = vmul.f32 %v202, 0.03125
  %v207 = vmul.f32 %v205, %v205
  %v208 = vsub.f32 %v206, %v207
  %v209 = vmax.f32 %v208, 0.0
  %v210 = vadd.f32 %v209, 1e-05
  %v211 = vrsqrt.pop %v210
  %v212 = vmul.f32 %v211, %v210
  %v213 = vmul.f32 %v212, %v211
  %v214 = vmul.f32 0.5, %v213
  %v215 = vsub.f32 1.5, %v214
  %v216 = vmul.f32 %v211, %v215
  %vm217 = vweird.f32 %v210
  %vm218 = vweird.f32 %v211
  %vm219 = vmor %vm217, %vm218
  %v220 = vsel %vm219, %v211, %v216
  %v221 = vmul.f32 %v203, %v220
  %v222 = vmul.f32 %v205, %v221
  %v223 = vsub.f32 %v204, %v222
  %v224 = vld [vmem:[%s174] sm:$0xf]
  %v225 = vld [vmem:[%s174 + $0x4] sm:$0xf]
  %v226 = vld [vmem:[%s174 + $0x8] sm:$0xf]
  %v227 = vld [vmem:[%s174 + $0xc] sm:$0xf]
  %v228 = vunpack.c.l.bf16 %v224
  %v229 = vunpack.c.l.bf16 %v225
  %v230 = vunpack.c.l.bf16 %v226
  %v231 = vunpack.c.l.bf16 %v227
  %v233 = vperm.slane %v221, 0
  %v235 = vmul.f32 %v228, %v233
  %v236 = vmul.f32 %v229, %v233
  %v237 = vmul.f32 %v230, %v233
  %v238 = vmul.f32 %v231, %v233
  %v240 = vperm.slane %v223, 0
  %v242 = vadd.f32 %v235, %v240
  %v243 = vadd.f32 %v236, %v240
  %v244 = vadd.f32 %v237, %v240
  %v245 = vadd.f32 %v238, %v240
  %v246 = vmax.f32 %v242, 0.0
  %v247 = vmax.f32 %v243, 0.0
  %v248 = vmax.f32 %v244, 0.0
  %v249 = vmax.f32 %v245, 0.0
  %v250 = vpack.c.bf16 %v246, %v246
  %v251 = vpack.c.bf16 %v247, %v247
  %v252 = vpack.c.bf16 %v248, %v248
  %v253 = vpack.c.bf16 %v249, %v249
  %v258 = vunpack.c.l.b16 %v250
  %v259 = vunpack.c.l.b16 %v251
  %v260 = vunpack.c.l.b16 %v252
  %v261 = vunpack.c.l.b16 %v253
  %v262 = vpack.c.b16 %v258, %v258
  %v263 = vpack.c.b16 %v259, %v259
  %v264 = vpack.c.b16 %v260, %v260
  %v265 = vpack.c.b16 %v261, %v261
  %vm266 = vcmask 1043456
  %v269 = vsel %vm266, 0, %v262
  %v272 = vsel %vm266, 0, %v264
  %v275 = vsel %vm266, %v263, 0
  %v278 = vsel %vm266, %v265, 0
  %vm284 = vcmask 1045504
  %v285 = vrot.slane %v269, 2
  %v286 = vrot.slane %v275, 2
  %v287 = vsel %vm284, %v285, %v286
  %v288 = vrot.slane %v272, 2
  %v289 = vrot.slane %v278, 2
  %v290 = vsel %vm284, %v288, %v289
  %vm293 = vcmask 1043456
  %v294 = vrot.slane %v269, 4
  %v295 = vrot.slane %v275, 4
  %v296 = vsel %vm293, %v294, %v295
  %v297 = vrot.slane %v272, 4
  %v298 = vrot.slane %v278, 4
  %v299 = vsel %vm293, %v297, %v298
  %vm302 = vcmask 1041408
  %v303 = vrot.slane %v269, 6
  %v304 = vrot.slane %v275, 6
  %v305 = vsel %vm302, %v303, %v304
  %v306 = vrot.slane %v272, 6
  %v307 = vrot.slane %v278, 6
  %v308 = vsel %vm302, %v306, %v307
  %v311 = vld [vmem:[%s5] sm:$0xff]
  %v312 = vld [vmem:[%s5 + $0x8] sm:$0xff]
  %v313 = vld [vmem:[%s5 + $0x10] sm:$0xff]
  %v314 = vld [vmem:[%s5 + $0x18] sm:$0xff]
  %v315 = vld [vmem:[%s5 + $0x20] sm:$0xff]
  %v316 = vld [vmem:[%s5 + $0x28] sm:$0xff]
  %v317 = vld [vmem:[%s5 + $0x30] sm:$0xff]
  %v318 = vld [vmem:[%s5 + $0x38] sm:$0xff]
  %v319 = vld [vmem:[%s5 + $0x40] sm:$0xff]
  %v320 = vld [vmem:[%s5 + $0x48] sm:$0xff]
  %v321 = vld [vmem:[%s5 + $0x50] sm:$0xff]
  %v322 = vld [vmem:[%s5 + $0x58] sm:$0xff]
  %v323 = vld [vmem:[%s5 + $0x60] sm:$0xff]
  %v324 = vld [vmem:[%s5 + $0x68] sm:$0xff]
  %v325 = vld [vmem:[%s5 + $0x70] sm:$0xff]
  %v326 = vld [vmem:[%s5 + $0x78] sm:$0xff]
  %v327 = vld [vmem:[%s5 + $0x80] sm:$0xff]
  %v328 = vld [vmem:[%s5 + $0x88] sm:$0xff]
  %v329 = vld [vmem:[%s5 + $0x90] sm:$0xff]
  %v330 = vld [vmem:[%s5 + $0x98] sm:$0xff]
  %v331 = vld [vmem:[%s5 + $0xa0] sm:$0xff]
  %v332 = vld [vmem:[%s5 + $0xa8] sm:$0xff]
  %v333 = vld [vmem:[%s5 + $0xb0] sm:$0xff]
  %v334 = vld [vmem:[%s5 + $0xb8] sm:$0xff]
  %v335 = vld [vmem:[%s5 + $0xc0] sm:$0xff]
  %v336 = vld [vmem:[%s5 + $0xc8] sm:$0xff]
  %v337 = vld [vmem:[%s5 + $0xd0] sm:$0xff]
  %v338 = vld [vmem:[%s5 + $0xd8] sm:$0xff]
  %v339 = vld [vmem:[%s5 + $0xe0] sm:$0xff]
  %v340 = vld [vmem:[%s5 + $0xe8] sm:$0xff]
  %v341 = vld [vmem:[%s5 + $0xf0] sm:$0xff]
  %v342 = vld [vmem:[%s5 + $0xf8] sm:$0xff]
  %v343 = vld [vmem:[%s5 + $0x100] sm:$0xff]
  %v344 = vld [vmem:[%s5 + $0x108] sm:$0xff]
  %v345 = vld [vmem:[%s5 + $0x110] sm:$0xff]
  %v346 = vld [vmem:[%s5 + $0x118] sm:$0xff]
  %v347 = vld [vmem:[%s5 + $0x120] sm:$0xff]
  %v348 = vld [vmem:[%s5 + $0x128] sm:$0xff]
  %v349 = vld [vmem:[%s5 + $0x130] sm:$0xff]
  %v350 = vld [vmem:[%s5 + $0x138] sm:$0xff]
  %v351 = vld [vmem:[%s5 + $0x140] sm:$0xff]
  %v352 = vld [vmem:[%s5 + $0x148] sm:$0xff]
  %v353 = vld [vmem:[%s5 + $0x150] sm:$0xff]
  %v354 = vld [vmem:[%s5 + $0x158] sm:$0xff]
  %v355 = vld [vmem:[%s5 + $0x160] sm:$0xff]
  %v356 = vld [vmem:[%s5 + $0x168] sm:$0xff]
  %v357 = vld [vmem:[%s5 + $0x170] sm:$0xff]
  %v358 = vld [vmem:[%s5 + $0x178] sm:$0xff]
  %v359 = vld [vmem:[%s5 + $0x180] sm:$0xff]
  %v360 = vld [vmem:[%s5 + $0x188] sm:$0xff]
  %v361 = vld [vmem:[%s5 + $0x190] sm:$0xff]
  %v362 = vld [vmem:[%s5 + $0x198] sm:$0xff]
  %v363 = vld [vmem:[%s5 + $0x1a0] sm:$0xff]
  %v364 = vld [vmem:[%s5 + $0x1a8] sm:$0xff]
  %v365 = vld [vmem:[%s5 + $0x1b0] sm:$0xff]
  %v366 = vld [vmem:[%s5 + $0x1b8] sm:$0xff]
  %v367 = vld [vmem:[%s5 + $0x1c0] sm:$0xff]
  %v368 = vld [vmem:[%s5 + $0x1c8] sm:$0xff]
  %v369 = vld [vmem:[%s5 + $0x1d0] sm:$0xff]
  %v370 = vld [vmem:[%s5 + $0x1d8] sm:$0xff]
  %v371 = vld [vmem:[%s5 + $0x1e0] sm:$0xff]
  %v372 = vld [vmem:[%s5 + $0x1e8] sm:$0xff]
  %v373 = vld [vmem:[%s5 + $0x1f0] sm:$0xff]
  %v374 = vld [vmem:[%s5 + $0x1f8] sm:$0xff]
  %v375 = vld [vmem:[%s5 + $0x200] sm:$0xff]
  %v376 = vld [vmem:[%s5 + $0x208] sm:$0xff]
  %v377 = vld [vmem:[%s5 + $0x210] sm:$0xff]
  %v378 = vld [vmem:[%s5 + $0x218] sm:$0xff]
  %v379 = vld [vmem:[%s5 + $0x220] sm:$0xff]
  %v380 = vld [vmem:[%s5 + $0x228] sm:$0xff]
  %v381 = vld [vmem:[%s5 + $0x230] sm:$0xff]
  %v382 = vld [vmem:[%s5 + $0x238] sm:$0xff]
  %v383 = vld [vmem:[%s5 + $0x240] sm:$0xff]
  %v384 = vld [vmem:[%s5 + $0x248] sm:$0xff]
  %v385 = vld [vmem:[%s5 + $0x250] sm:$0xff]
  %v386 = vld [vmem:[%s5 + $0x258] sm:$0xff]
  %v387 = vld [vmem:[%s5 + $0x260] sm:$0xff]
  %v388 = vld [vmem:[%s5 + $0x268] sm:$0xff]
  %v389 = vld [vmem:[%s5 + $0x270] sm:$0xff]
  %v390 = vld [vmem:[%s5 + $0x278] sm:$0xff]
  %v391 = vld [vmem:[%s6] sm:$0x3]
  %v393 = vperm.slane %v391, 0
  %v394 = vperm.slane %v391, 1
  %v477 = vunpack.c.l.b16 %v311
  %v478 = vunpack.c.h.b16 %v311
  %v479 = vunpack.c.l.b16 %v312
  %v480 = vunpack.c.h.b16 %v312
  %v481 = vunpack.c.l.b16 %v313
  %v482 = vunpack.c.h.b16 %v313
  %v483 = vunpack.c.l.b16 %v314
  %v484 = vunpack.c.h.b16 %v314
  %v485 = vunpack.c.l.b16 %v315
  %v486 = vunpack.c.h.b16 %v315
  %v487 = vunpack.c.l.b16 %v316
  %v488 = vunpack.c.h.b16 %v316
  %v489 = vunpack.c.l.b16 %v317
  %v490 = vunpack.c.h.b16 %v317
  %v491 = vunpack.c.l.b16 %v318
  %v492 = vunpack.c.h.b16 %v318
  %v493 = vunpack.c.l.b16 %v319
  %v494 = vunpack.c.h.b16 %v319
  %v495 = vunpack.c.l.b16 %v320
  %v496 = vunpack.c.h.b16 %v320
  %v497 = vunpack.c.l.b16 %v321
  %v498 = vunpack.c.h.b16 %v321
  %v499 = vunpack.c.l.b16 %v322
  %v500 = vunpack.c.h.b16 %v322
  %v501 = vunpack.c.l.b16 %v323
  %v502 = vunpack.c.h.b16 %v323
  %v503 = vunpack.c.l.b16 %v324
  %v504 = vunpack.c.h.b16 %v324
  %v505 = vunpack.c.l.b16 %v325
  %v506 = vunpack.c.h.b16 %v325
  %v507 = vunpack.c.l.b16 %v326
  %v508 = vunpack.c.h.b16 %v326
  %v509 = vunpack.c.l.b16 %v327
  %v510 = vunpack.c.h.b16 %v327
  %v511 = vunpack.c.l.b16 %v328
  %v512 = vunpack.c.h.b16 %v328
  %v513 = vunpack.c.l.b16 %v329
  %v514 = vunpack.c.h.b16 %v329
  %v515 = vunpack.c.l.b16 %v330
  %v516 = vunpack.c.h.b16 %v330
  %v517 = vunpack.c.l.b16 %v331
  %v518 = vunpack.c.h.b16 %v331
  %v519 = vunpack.c.l.b16 %v332
  %v520 = vunpack.c.h.b16 %v332
  %v521 = vunpack.c.l.b16 %v333
  %v522 = vunpack.c.h.b16 %v333
  %v523 = vunpack.c.l.b16 %v334
  %v524 = vunpack.c.h.b16 %v334
  %v525 = vunpack.c.l.b16 %v335
  %v526 = vunpack.c.h.b16 %v335
  %v527 = vunpack.c.l.b16 %v336
  %v528 = vunpack.c.h.b16 %v336
  %v529 = vunpack.c.l.b16 %v337
  %v530 = vunpack.c.h.b16 %v337
  %v531 = vunpack.c.l.b16 %v338
  %v532 = vunpack.c.h.b16 %v338
  %v533 = vunpack.c.l.b16 %v339
  %v534 = vunpack.c.h.b16 %v339
  %v535 = vunpack.c.l.b16 %v340
  %v536 = vunpack.c.h.b16 %v340
  %v537 = vunpack.c.l.b16 %v341
  %v538 = vunpack.c.h.b16 %v341
  %v539 = vunpack.c.l.b16 %v342
  %v540 = vunpack.c.h.b16 %v342
  %v541 = vunpack.c.l.b16 %v343
  %v542 = vunpack.c.h.b16 %v343
  %v543 = vunpack.c.l.b16 %v344
  %v544 = vunpack.c.h.b16 %v344
  %v545 = vunpack.c.l.b16 %v345
  %v546 = vunpack.c.h.b16 %v345
  %v547 = vunpack.c.l.b16 %v346
  %v548 = vunpack.c.h.b16 %v346
  %v549 = vunpack.c.l.b16 %v347
  %v550 = vunpack.c.h.b16 %v347
  %v551 = vunpack.c.l.b16 %v348
  %v552 = vunpack.c.h.b16 %v348
  %v553 = vunpack.c.l.b16 %v349
  %v554 = vunpack.c.h.b16 %v349
  %v555 = vunpack.c.l.b16 %v350
  %v556 = vunpack.c.h.b16 %v350
  %v557 = vunpack.c.l.b16 %v351
  %v558 = vunpack.c.h.b16 %v351
  %v559 = vunpack.c.l.b16 %v352
  %v560 = vunpack.c.h.b16 %v352
  %v561 = vunpack.c.l.b16 %v353
  %v562 = vunpack.c.h.b16 %v353
  %v563 = vunpack.c.l.b16 %v354
  %v564 = vunpack.c.h.b16 %v354
  %v565 = vunpack.c.l.b16 %v355
  %v566 = vunpack.c.h.b16 %v355
  %v567 = vunpack.c.l.b16 %v356
  %v568 = vunpack.c.h.b16 %v356
  %v569 = vunpack.c.l.b16 %v357
  %v570 = vunpack.c.h.b16 %v357
  %v571 = vunpack.c.l.b16 %v358
  %v572 = vunpack.c.h.b16 %v358
  %v573 = vunpack.c.l.b16 %v359
  %v574 = vunpack.c.h.b16 %v359
  %v575 = vunpack.c.l.b16 %v360
  %v576 = vunpack.c.h.b16 %v360
  %v577 = vunpack.c.l.b16 %v361
  %v578 = vunpack.c.h.b16 %v361
  %v579 = vunpack.c.l.b16 %v362
  %v580 = vunpack.c.h.b16 %v362
  %v581 = vunpack.c.l.b16 %v363
  %v582 = vunpack.c.h.b16 %v363
  %v583 = vunpack.c.l.b16 %v364
  %v584 = vunpack.c.h.b16 %v364
  %v585 = vunpack.c.l.b16 %v365
  %v586 = vunpack.c.h.b16 %v365
  %v587 = vunpack.c.l.b16 %v366
  %v588 = vunpack.c.h.b16 %v366
  %v589 = vunpack.c.l.b16 %v367
  %v590 = vunpack.c.h.b16 %v367
  %v591 = vunpack.c.l.b16 %v368
  %v592 = vunpack.c.h.b16 %v368
  %v593 = vunpack.c.l.b16 %v369
  %v594 = vunpack.c.h.b16 %v369
  %v595 = vunpack.c.l.b16 %v370
  %v596 = vunpack.c.h.b16 %v370
  %v597 = vunpack.c.l.b16 %v371
  %v598 = vunpack.c.h.b16 %v371
  %v599 = vunpack.c.l.b16 %v372
  %v600 = vunpack.c.h.b16 %v372
  %v601 = vunpack.c.l.b16 %v373
  %v602 = vunpack.c.h.b16 %v373
  %v603 = vunpack.c.l.b16 %v374
  %v604 = vunpack.c.h.b16 %v374
  %v605 = vunpack.c.l.b16 %v375
  %v606 = vunpack.c.h.b16 %v375
  %v607 = vunpack.c.l.b16 %v376
  %v608 = vunpack.c.h.b16 %v376
  %v609 = vunpack.c.l.b16 %v377
  %v610 = vunpack.c.h.b16 %v377
  %v611 = vunpack.c.l.b16 %v378
  %v612 = vunpack.c.h.b16 %v378
  %v613 = vunpack.c.l.b16 %v379
  %v614 = vunpack.c.h.b16 %v379
  %v615 = vunpack.c.l.b16 %v380
  %v616 = vunpack.c.h.b16 %v380
  %v617 = vunpack.c.l.b16 %v381
  %v618 = vunpack.c.h.b16 %v381
  %v619 = vunpack.c.l.b16 %v382
  %v620 = vunpack.c.h.b16 %v382
  %v621 = vunpack.c.l.b16 %v383
  %v622 = vunpack.c.h.b16 %v383
  %v623 = vunpack.c.l.b16 %v384
  %v624 = vunpack.c.h.b16 %v384
  %v625 = vunpack.c.l.b16 %v385
  %v626 = vunpack.c.h.b16 %v385
  %v627 = vunpack.c.l.b16 %v386
  %v628 = vunpack.c.h.b16 %v386
  %v629 = vunpack.c.l.b16 %v387
  %v630 = vunpack.c.h.b16 %v387
  %v631 = vunpack.c.l.b16 %v388
  %v632 = vunpack.c.h.b16 %v388
  %v633 = vunpack.c.l.b16 %v389
  %v634 = vunpack.c.h.b16 %v389
  %v635 = vunpack.c.l.b16 %v390
  %v636 = vunpack.c.h.b16 %v390
  %v637 = vpack.c.b16 %v479, %v477
  %v638 = vpack.c.b16 %v480, %v478
  %v639 = vpack.c.b16 %v483, %v481
  %v640 = vpack.c.b16 %v484, %v482
  %v641 = vpack.c.b16 %v487, %v485
  %v642 = vpack.c.b16 %v488, %v486
  %v643 = vpack.c.b16 %v491, %v489
  %v644 = vpack.c.b16 %v492, %v490
  %v645 = vpack.c.b16 %v495, %v493
  %v646 = vpack.c.b16 %v496, %v494
  %v647 = vpack.c.b16 %v499, %v497
  %v648 = vpack.c.b16 %v500, %v498
  %v649 = vpack.c.b16 %v503, %v501
  %v650 = vpack.c.b16 %v504, %v502
  %v651 = vpack.c.b16 %v507, %v505
  %v652 = vpack.c.b16 %v508, %v506
  %v653 = vpack.c.b16 %v511, %v509
  %v654 = vpack.c.b16 %v512, %v510
  %v655 = vpack.c.b16 %v515, %v513
  %v656 = vpack.c.b16 %v516, %v514
  %v657 = vpack.c.b16 %v519, %v517
  %v658 = vpack.c.b16 %v520, %v518
  %v659 = vpack.c.b16 %v523, %v521
  %v660 = vpack.c.b16 %v524, %v522
  %v661 = vpack.c.b16 %v527, %v525
  %v662 = vpack.c.b16 %v528, %v526
  %v663 = vpack.c.b16 %v531, %v529
  %v664 = vpack.c.b16 %v532, %v530
  %v665 = vpack.c.b16 %v535, %v533
  %v666 = vpack.c.b16 %v536, %v534
  %v667 = vpack.c.b16 %v539, %v537
  %v668 = vpack.c.b16 %v540, %v538
  %v669 = vpack.c.b16 %v543, %v541
  %v670 = vpack.c.b16 %v544, %v542
  %v671 = vpack.c.b16 %v547, %v545
  %v672 = vpack.c.b16 %v548, %v546
  %v673 = vpack.c.b16 %v551, %v549
  %v674 = vpack.c.b16 %v552, %v550
  %v675 = vpack.c.b16 %v555, %v553
  %v676 = vpack.c.b16 %v556, %v554
  %v677 = vpack.c.b16 %v559, %v557
  %v678 = vpack.c.b16 %v560, %v558
  %v679 = vpack.c.b16 %v563, %v561
  %v680 = vpack.c.b16 %v564, %v562
  %v681 = vpack.c.b16 %v567, %v565
  %v682 = vpack.c.b16 %v568, %v566
  %v683 = vpack.c.b16 %v571, %v569
  %v684 = vpack.c.b16 %v572, %v570
  %v685 = vpack.c.b16 %v575, %v573
  %v686 = vpack.c.b16 %v576, %v574
  %v687 = vpack.c.b16 %v579, %v577
  %v688 = vpack.c.b16 %v580, %v578
  %v689 = vpack.c.b16 %v583, %v581
  %v690 = vpack.c.b16 %v584, %v582
  %v691 = vpack.c.b16 %v587, %v585
  %v692 = vpack.c.b16 %v588, %v586
  %v693 = vpack.c.b16 %v591, %v589
  %v694 = vpack.c.b16 %v592, %v590
  %v695 = vpack.c.b16 %v595, %v593
  %v696 = vpack.c.b16 %v596, %v594
  %v697 = vpack.c.b16 %v599, %v597
  %v698 = vpack.c.b16 %v600, %v598
  %v699 = vpack.c.b16 %v603, %v601
  %v700 = vpack.c.b16 %v604, %v602
  %v701 = vpack.c.b16 %v607, %v605
  %v702 = vpack.c.b16 %v608, %v606
  %v703 = vpack.c.b16 %v611, %v609
  %v704 = vpack.c.b16 %v612, %v610
  %v705 = vpack.c.b16 %v615, %v613
  %v706 = vpack.c.b16 %v616, %v614
  %v707 = vpack.c.b16 %v619, %v617
  %v708 = vpack.c.b16 %v620, %v618
  %v709 = vpack.c.b16 %v623, %v621
  %v710 = vpack.c.b16 %v624, %v622
  %v711 = vpack.c.b16 %v627, %v625
  %v712 = vpack.c.b16 %v628, %v626
  %v713 = vpack.c.b16 %v631, %v629
  %v714 = vpack.c.b16 %v632, %v630
  %v715 = vpack.c.b16 %v635, %v633
  %v716 = vpack.c.b16 %v636, %v634
  %797 = vmatpush.bf16.msra.mxu0 %v651
  %798 = vmatpush.bf16.msra.mxu0 %v649
  %799 = vmatpush.bf16.msra.mxu0 %v647
  %800 = vmatpush.bf16.msra.mxu0 %v645
  %801 = vmatpush.bf16.msra.mxu0 %v643
  %802 = vmatpush.bf16.msra.mxu0 %v641
  %803 = vmatpush.bf16.msra.mxu0 %v639
  %804 = vmatpush.bf16.msra.mxu0 %v637
  %805 = vmatmul.bf16.gmra.mxu0 %v269
  %v806 = vpop.f32.mrf.mxu0
  %v807 = vadd.f32 %v393, %v806
  %v808 = vpop.f32.mrf.mxu0
  %v809 = vadd.f32 %v393, %v808
  %810 = vmatmul.bf16.gmra.mxu0 %v272
  %v811 = vpop.f32.mrf.mxu0
  %v812 = vadd.f32 %v393, %v811
  %v813 = vpop.f32.mrf.mxu0
  %v814 = vadd.f32 %v393, %v813
  %815 = vdwg.mxu0
  %816 = vmatpush.bf16.msra.mxu0 %v667
  %817 = vmatpush.bf16.msra.mxu0 %v665
  %818 = vmatpush.bf16.msra.mxu0 %v663
  %819 = vmatpush.bf16.msra.mxu0 %v661
  %820 = vmatpush.bf16.msra.mxu0 %v659
  %821 = vmatpush.bf16.msra.mxu0 %v657
  %822 = vmatpush.bf16.msra.mxu0 %v655
  %823 = vmatpush.bf16.msra.mxu0 %v653
  %824 = vmatmul.bf16.gmra.mxu0 %v287
  %v825 = vpop.f32.mrf.mxu0
  %v826 = vadd.f32 %v807, %v825
  %v827 = vpop.f32.mrf.mxu0
  %v828 = vadd.f32 %v809, %v827
  %829 = vmatmul.bf16.gmra.mxu0 %v290
  %v830 = vpop.f32.mrf.mxu0
  %v831 = vadd.f32 %v812, %v830
  %v832 = vpop.f32.mrf.mxu0
  %v833 = vadd.f32 %v814, %v832
  %834 = vdwg.mxu0
  %835 = vmatpush.bf16.msra.mxu0 %v683
  %836 = vmatpush.bf16.msra.mxu0 %v681
  %837 = vmatpush.bf16.msra.mxu0 %v679
  %838 = vmatpush.bf16.msra.mxu0 %v677
  %839 = vmatpush.bf16.msra.mxu0 %v675
  %840 = vmatpush.bf16.msra.mxu0 %v673
  %841 = vmatpush.bf16.msra.mxu0 %v671
  %842 = vmatpush.bf16.msra.mxu0 %v669
  %843 = vmatmul.bf16.gmra.mxu0 %v296
  %v844 = vpop.f32.mrf.mxu0
  %v845 = vadd.f32 %v826, %v844
  %v846 = vpop.f32.mrf.mxu0
  %v847 = vadd.f32 %v828, %v846
  %848 = vmatmul.bf16.gmra.mxu0 %v299
  %v849 = vpop.f32.mrf.mxu0
  %v850 = vadd.f32 %v831, %v849
  %v851 = vpop.f32.mrf.mxu0
  %v852 = vadd.f32 %v833, %v851
  %853 = vdwg.mxu0
  %854 = vmatpush.bf16.msra.mxu0 %v699
  %855 = vmatpush.bf16.msra.mxu0 %v697
  %856 = vmatpush.bf16.msra.mxu0 %v695
  %857 = vmatpush.bf16.msra.mxu0 %v693
  %858 = vmatpush.bf16.msra.mxu0 %v691
  %859 = vmatpush.bf16.msra.mxu0 %v689
  %860 = vmatpush.bf16.msra.mxu0 %v687
  %861 = vmatpush.bf16.msra.mxu0 %v685
  %862 = vmatmul.bf16.gmra.mxu0 %v305
  %v863 = vpop.f32.mrf.mxu0
  %v864 = vadd.f32 %v845, %v863
  %v865 = vpop.f32.mrf.mxu0
  %v866 = vadd.f32 %v847, %v865
  %867 = vmatmul.bf16.gmra.mxu0 %v308
  %v868 = vpop.f32.mrf.mxu0
  %v869 = vadd.f32 %v850, %v868
  %v870 = vpop.f32.mrf.mxu0
  %v871 = vadd.f32 %v852, %v870
  %872 = vdwg.mxu0
  %873 = vmatpush.bf16.msra.mxu0 %v715
  %874 = vmatpush.bf16.msra.mxu0 %v713
  %875 = vmatpush.bf16.msra.mxu0 %v711
  %876 = vmatpush.bf16.msra.mxu0 %v709
  %877 = vmatpush.bf16.msra.mxu0 %v707
  %878 = vmatpush.bf16.msra.mxu0 %v705
  %879 = vmatpush.bf16.msra.mxu0 %v703
  %880 = vmatpush.bf16.msra.mxu0 %v701
  %881 = vmatmul.bf16.gmra.mxu0 %v275
  %v882 = vpop.f32.mrf.mxu0
  %v883 = vadd.f32 %v864, %v882
  %v884 = vpop.f32.mrf.mxu0
  %v885 = vadd.f32 %v866, %v884
  %886 = vmatmul.bf16.gmra.mxu0 %v278
  %v887 = vpop.f32.mrf.mxu0
  %v888 = vadd.f32 %v869, %v887
  %v889 = vpop.f32.mrf.mxu0
  %v890 = vadd.f32 %v871, %v889
  %891 = vdwg.mxu0
  %892 = vmatpush.bf16.msra.mxu0 %v652
  %893 = vmatpush.bf16.msra.mxu0 %v650
  %894 = vmatpush.bf16.msra.mxu0 %v648
  %895 = vmatpush.bf16.msra.mxu0 %v646
  %896 = vmatpush.bf16.msra.mxu0 %v644
  %897 = vmatpush.bf16.msra.mxu0 %v642
  %898 = vmatpush.bf16.msra.mxu0 %v640
  %899 = vmatpush.bf16.msra.mxu0 %v638
  %900 = vmatmul.bf16.gmra.mxu0 %v269
  %v901 = vpop.f32.mrf.mxu0
  %v902 = vadd.f32 %v394, %v901
  %v903 = vpop.f32.mrf.mxu0
  %v904 = vadd.f32 %v394, %v903
  %905 = vmatmul.bf16.gmra.mxu0 %v272
  %v906 = vpop.f32.mrf.mxu0
  %v907 = vadd.f32 %v394, %v906
  %v908 = vpop.f32.mrf.mxu0
  %v909 = vadd.f32 %v394, %v908
  %910 = vdwg.mxu0
  %911 = vmatpush.bf16.msra.mxu0 %v668
  %912 = vmatpush.bf16.msra.mxu0 %v666
  %913 = vmatpush.bf16.msra.mxu0 %v664
  %914 = vmatpush.bf16.msra.mxu0 %v662
  %915 = vmatpush.bf16.msra.mxu0 %v660
  %916 = vmatpush.bf16.msra.mxu0 %v658
  %917 = vmatpush.bf16.msra.mxu0 %v656
  %918 = vmatpush.bf16.msra.mxu0 %v654
  %919 = vmatmul.bf16.gmra.mxu0 %v287
  %v920 = vpop.f32.mrf.mxu0
  %v921 = vadd.f32 %v902, %v920
  %v922 = vpop.f32.mrf.mxu0
  %v923 = vadd.f32 %v904, %v922
  %924 = vmatmul.bf16.gmra.mxu0 %v290
  %v925 = vpop.f32.mrf.mxu0
  %v926 = vadd.f32 %v907, %v925
  %v927 = vpop.f32.mrf.mxu0
  %v928 = vadd.f32 %v909, %v927
  %929 = vdwg.mxu0
  %930 = vmatpush.bf16.msra.mxu0 %v684
  %931 = vmatpush.bf16.msra.mxu0 %v682
  %932 = vmatpush.bf16.msra.mxu0 %v680
  %933 = vmatpush.bf16.msra.mxu0 %v678
  %934 = vmatpush.bf16.msra.mxu0 %v676
  %935 = vmatpush.bf16.msra.mxu0 %v674
  %936 = vmatpush.bf16.msra.mxu0 %v672
  %937 = vmatpush.bf16.msra.mxu0 %v670
  %938 = vmatmul.bf16.gmra.mxu0 %v296
  %v939 = vpop.f32.mrf.mxu0
  %v940 = vadd.f32 %v921, %v939
  %v941 = vpop.f32.mrf.mxu0
  %v942 = vadd.f32 %v923, %v941
  %943 = vmatmul.bf16.gmra.mxu0 %v299
  %v944 = vpop.f32.mrf.mxu0
  %v945 = vadd.f32 %v926, %v944
  %v946 = vpop.f32.mrf.mxu0
  %v947 = vadd.f32 %v928, %v946
  %948 = vdwg.mxu0
  %949 = vmatpush.bf16.msra.mxu0 %v700
  %950 = vmatpush.bf16.msra.mxu0 %v698
  %951 = vmatpush.bf16.msra.mxu0 %v696
  %952 = vmatpush.bf16.msra.mxu0 %v694
  %953 = vmatpush.bf16.msra.mxu0 %v692
  %954 = vmatpush.bf16.msra.mxu0 %v690
  %955 = vmatpush.bf16.msra.mxu0 %v688
  %956 = vmatpush.bf16.msra.mxu0 %v686
  %957 = vmatmul.bf16.gmra.mxu0 %v305
  %v958 = vpop.f32.mrf.mxu0
  %v959 = vadd.f32 %v940, %v958
  %v960 = vpop.f32.mrf.mxu0
  %v961 = vadd.f32 %v942, %v960
  %962 = vmatmul.bf16.gmra.mxu0 %v308
  %v963 = vpop.f32.mrf.mxu0
  %v964 = vadd.f32 %v945, %v963
  %v965 = vpop.f32.mrf.mxu0
  %v966 = vadd.f32 %v947, %v965
  %967 = vdwg.mxu0
  %968 = vmatpush.bf16.msra.mxu0 %v716
  %969 = vmatpush.bf16.msra.mxu0 %v714
  %970 = vmatpush.bf16.msra.mxu0 %v712
  %971 = vmatpush.bf16.msra.mxu0 %v710
  %972 = vmatpush.bf16.msra.mxu0 %v708
  %973 = vmatpush.bf16.msra.mxu0 %v706
  %974 = vmatpush.bf16.msra.mxu0 %v704
  %975 = vmatpush.bf16.msra.mxu0 %v702
  %976 = vmatmul.bf16.gmra.mxu0 %v275
  %v977 = vpop.f32.mrf.mxu0
  %v978 = vadd.f32 %v959, %v977
  %v979 = vpop.f32.mrf.mxu0
  %v980 = vadd.f32 %v961, %v979
  %981 = vmatmul.bf16.gmra.mxu0 %v278
  %v982 = vpop.f32.mrf.mxu0
  %v983 = vadd.f32 %v964, %v982
  %v984 = vpop.f32.mrf.mxu0
  %v985 = vadd.f32 %v966, %v984
  %986 = vdwg.mxu0
  %v987 = vpack.c.bf16 %v978, %v883
  %v988 = vpack.c.bf16 %v980, %v885
  %v989 = vpack.c.bf16 %v983, %v888
  %v990 = vpack.c.bf16 %v985, %v890
  %s991 = smul.u32 0, 4
  %s992 = smul.addr %s991, 4
  %s993 = scalar_lea.vmem [#allocation3], %s992
  %994 = vst [vmem:[%s993] sm:$0xff] %v987
  %995 = vst [vmem:[%s993 + $0x8] sm:$0xff] %v988
  %996 = vst [vmem:[%s993 + $0x10] sm:$0xff] %v989
  %997 = vst [vmem:[%s993 + $0x18] sm:$0xff] %v990
  %v998 = vadd.f32 %v883, %v885
  %v999 = vadd.f32 %v998, %v888
  %v1000 = vadd.f32 %v999, %v890
  %v1001 = vrot.slane %v1000, 4
  %v1002 = vadd.f32 %v1000, %v1001
  %v1003 = vrot.slane %v1002, 2
  %v1004 = vadd.f32 %v1002, %v1003
  %v1005 = vrot.slane %v1004, 1
  %v1006 = vadd.f32 %v1004, %v1005
  %v1007 = vadd.f32 %v978, %v980
  %v1008 = vadd.f32 %v1007, %v983
  %v1009 = vadd.f32 %v1008, %v985
  %v1010 = vrot.slane %v1009, 4
  %v1011 = vadd.f32 %v1009, %v1010
  %v1012 = vrot.slane %v1011, 2
  %v1013 = vadd.f32 %v1011, %v1012
  %v1014 = vrot.slane %v1013, 1
  %v1015 = vadd.f32 %v1013, %v1014
  %v1016 = vadd.f32 %v1006, 0.0
  %v1017 = vadd.f32 %v1015, 0.0
  %v1018 = vmul.f32 %v883, %v883
  %v1019 = vmul.f32 %v978, %v978
  %v1020 = vmul.f32 %v885, %v885
  %v1021 = vmul.f32 %v980, %v980
  %v1022 = vmul.f32 %v888, %v888
  %v1023 = vmul.f32 %v983, %v983
  %v1024 = vmul.f32 %v890, %v890
  %v1025 = vmul.f32 %v985, %v985
  %v1026 = vadd.f32 %v1018, %v1020
  %v1027 = vadd.f32 %v1026, %v1022
  %v1028 = vadd.f32 %v1027, %v1024
  %v1029 = vrot.slane %v1028, 4
  %v1030 = vadd.f32 %v1028, %v1029
  %v1031 = vrot.slane %v1030, 2
  %v1032 = vadd.f32 %v1030, %v1031
  %v1033 = vrot.slane %v1032, 1
  %v1034 = vadd.f32 %v1032, %v1033
  %v1035 = vadd.f32 %v1019, %v1021
  %v1036 = vadd.f32 %v1035, %v1023
  %v1037 = vadd.f32 %v1036, %v1025
  %v1038 = vrot.slane %v1037, 4
  %v1039 = vadd.f32 %v1037, %v1038
  %v1040 = vrot.slane %v1039, 2
  %v1041 = vadd.f32 %v1039, %v1040
  %v1042 = vrot.slane %v1041, 1
  %v1043 = vadd.f32 %v1041, %v1042
  %v1044 = vadd.f32 %v1034, 0.0
  %v1045 = vadd.f32 %v1043, 0.0
  %v1046 = vld [vmem:[%s7] sm:$0x3]
  %v1047 = vld [vmem:[%s8] sm:$0x3]
  %v1048 = vmul.f32 %v1016, 0.03125
  %v1049 = vmul.f32 %v1017, 0.03125
  %v1050 = vmul.f32 %v1044, 0.03125
  %v1051 = vmul.f32 %v1045, 0.03125
  %v1052 = vmul.f32 %v1048, %v1048
  %v1053 = vmul.f32 %v1049, %v1049
  %v1054 = vsub.f32 %v1050, %v1052
  %v1055 = vsub.f32 %v1051, %v1053
  %v1056 = vmax.f32 %v1054, 0.0
  %v1057 = vmax.f32 %v1055, 0.0
  %v1058 = vadd.f32 %v1056, 1e-05
  %v1059 = vadd.f32 %v1057, 1e-05
  %v1060 = vrsqrt.pop %v1058
  %v1061 = vmul.f32 %v1060, %v1058
  %v1062 = vmul.f32 %v1061, %v1060
  %v1063 = vmul.f32 0.5, %v1062
  %v1064 = vsub.f32 1.5, %v1063
  %v1065 = vmul.f32 %v1060, %v1064
  %vm1066 = vweird.f32 %v1058
  %vm1067 = vweird.f32 %v1060
  %vm1068 = vmor %vm1066, %vm1067
  %v1069 = vsel %vm1068, %v1060, %v1065
  %v1070 = vrsqrt.pop %v1059
  %v1071 = vmul.f32 %v1070, %v1059
  %v1072 = vmul.f32 %v1071, %v1070
  %v1073 = vmul.f32 0.5, %v1072
  %v1074 = vsub.f32 1.5, %v1073
  %v1075 = vmul.f32 %v1070, %v1074
  %vm1076 = vweird.f32 %v1059
  %vm1077 = vweird.f32 %v1070
  %vm1078 = vmor %vm1076, %vm1077
  %v1079 = vsel %vm1078, %v1070, %v1075
  %v1082 = vrot.slane %v1079, 7
  %vm1083 = vcmask 1040384
  %v1084 = vsel %vm1083, %v1069, %v1082
  %v1086 = vmul.f32 %v1046, %v1084
  %v1088 = vperm.slane %v1086, 0
  %v1089 = vperm.slane %v1086, 1
  %v1092 = vmul.f32 %v1048, %v1088
  %v1093 = vmul.f32 %v1049, %v1089
  %v1096 = vrot.slane %v1093, 7
  %v1097 = vsel %vm1083, %v1092, %v1096
  %v1099 = vsub.f32 %v1047, %v1097
  %v1100 = vld [vmem:[%s993] sm:$0xff]
  %v1101 = vld [vmem:[%s993 + $0x8] sm:$0xff]
  %v1102 = vld [vmem:[%s993 + $0x10] sm:$0xff]
  %v1103 = vld [vmem:[%s993 + $0x18] sm:$0xff]
  %v1104 = vunpack.c.l.bf16 %v1100
  %v1105 = vunpack.c.h.bf16 %v1100
  %v1106 = vunpack.c.l.bf16 %v1101
  %v1107 = vunpack.c.h.bf16 %v1101
  %v1108 = vunpack.c.l.bf16 %v1102
  %v1109 = vunpack.c.h.bf16 %v1102
  %v1110 = vunpack.c.l.bf16 %v1103
  %v1111 = vunpack.c.h.bf16 %v1103
  %v1112 = vmul.f32 %v1104, %v1088
  %v1113 = vmul.f32 %v1105, %v1089
  %v1114 = vmul.f32 %v1106, %v1088
  %v1115 = vmul.f32 %v1107, %v1089
  %v1116 = vmul.f32 %v1108, %v1088
  %v1117 = vmul.f32 %v1109, %v1089
  %v1118 = vmul.f32 %v1110, %v1088
  %v1119 = vmul.f32 %v1111, %v1089
  %v1121 = vperm.slane %v1099, 0
  %v1122 = vperm.slane %v1099, 1
  %v1125 = vadd.f32 %v1112, %v1121
  %v1126 = vadd.f32 %v1113, %v1122
  %v1127 = vadd.f32 %v1114, %v1121
  %v1128 = vadd.f32 %v1115, %v1122
  %v1129 = vadd.f32 %v1116, %v1121
  %v1130 = vadd.f32 %v1117, %v1122
  %v1131 = vadd.f32 %v1118, %v1121
  %v1132 = vadd.f32 %v1119, %v1122
  %v1133 = vmax.f32 %v1125, 0.0
  %v1134 = vmax.f32 %v1126, 0.0
  %v1135 = vmax.f32 %v1127, 0.0
  %v1136 = vmax.f32 %v1128, 0.0
  %v1137 = vmax.f32 %v1129, 0.0
  %v1138 = vmax.f32 %v1130, 0.0
  %v1139 = vmax.f32 %v1131, 0.0
  %v1140 = vmax.f32 %v1132, 0.0
  %v1141 = vpack.c.bf16 %v1134, %v1133
  %v1142 = vpack.c.bf16 %v1136, %v1135
  %v1143 = vpack.c.bf16 %v1138, %v1137
  %v1144 = vpack.c.bf16 %v1140, %v1139
  %v1149 = vunpack.c.l.b16 %v1141
  %v1150 = vunpack.c.h.b16 %v1141
  %v1151 = vunpack.c.l.b16 %v1142
  %v1152 = vunpack.c.h.b16 %v1142
  %v1153 = vunpack.c.l.b16 %v1143
  %v1154 = vunpack.c.h.b16 %v1143
  %v1155 = vunpack.c.l.b16 %v1144
  %v1156 = vunpack.c.h.b16 %v1144
  %v1157 = vpack.c.b16 %v1149, %v1149
  %v1158 = vpack.c.b16 %v1150, %v1150
  %v1159 = vpack.c.b16 %v1151, %v1151
  %v1160 = vpack.c.b16 %v1152, %v1152
  %v1161 = vpack.c.b16 %v1153, %v1153
  %v1162 = vpack.c.b16 %v1154, %v1154
  %v1163 = vpack.c.b16 %v1155, %v1155
  %v1164 = vpack.c.b16 %v1156, %v1156
  %v1166 = vsel %vm266, 0, %v1157
  %v1169 = vsel %vm266, 0, %v1158
  %v1172 = vsel %vm266, 0, %v1161
  %v1175 = vsel %vm266, 0, %v1162
  %v1178 = vsel %vm266, %v1159, 0
  %v1181 = vsel %vm266, %v1160, 0
  %v1184 = vsel %vm266, %v1163, 0
  %v1187 = vsel %vm266, %v1164, 0
  %v1197 = vrot.slane %v1166, 4
  %v1198 = vrot.slane %v1178, 4
  %v1199 = vsel %vm293, %v1197, %v1198
  %v1200 = vrot.slane %v1169, 4
  %v1201 = vrot.slane %v1181, 4
  %v1202 = vsel %vm293, %v1200, %v1201
  %v1203 = vrot.slane %v1172, 4
  %v1204 = vrot.slane %v1184, 4
  %v1205 = vsel %vm293, %v1203, %v1204
  %v1206 = vrot.slane %v1175, 4
  %v1207 = vrot.slane %v1187, 4
  %v1208 = vsel %vm293, %v1206, %v1207
  %v1213 = vld [vmem:[%s9] sm:$0xf]
  %v1214 = vld [vmem:[%s9 + $0x4] sm:$0xf]
  %v1215 = vld [vmem:[%s9 + $0x8] sm:$0xf]
  %v1216 = vld [vmem:[%s9 + $0xc] sm:$0xf]
  %v1217 = vld [vmem:[%s9 + $0x10] sm:$0xf]
  %v1218 = vld [vmem:[%s9 + $0x14] sm:$0xf]
  %v1219 = vld [vmem:[%s9 + $0x18] sm:$0xf]
  %v1220 = vld [vmem:[%s9 + $0x1c] sm:$0xf]
  %v1221 = vld [vmem:[%s9 + $0x20] sm:$0xf]
  %v1222 = vld [vmem:[%s9 + $0x24] sm:$0xf]
  %v1223 = vld [vmem:[%s9 + $0x28] sm:$0xf]
  %v1224 = vld [vmem:[%s9 + $0x2c] sm:$0xf]
  %v1225 = vld [vmem:[%s9 + $0x30] sm:$0xf]
  %v1226 = vld [vmem:[%s9 + $0x34] sm:$0xf]
  %v1227 = vld [vmem:[%s9 + $0x38] sm:$0xf]
  %v1228 = vld [vmem:[%s9 + $0x3c] sm:$0xf]
  %v1229 = vld [vmem:[%s9 + $0x40] sm:$0xf]
  %v1230 = vld [vmem:[%s9 + $0x44] sm:$0xf]
  %v1231 = vld [vmem:[%s9 + $0x48] sm:$0xf]
  %v1232 = vld [vmem:[%s9 + $0x4c] sm:$0xf]
  %v1233 = vld [vmem:[%s9 + $0x50] sm:$0xf]
  %v1234 = vld [vmem:[%s9 + $0x54] sm:$0xf]
  %v1235 = vld [vmem:[%s9 + $0x58] sm:$0xf]
  %v1236 = vld [vmem:[%s9 + $0x5c] sm:$0xf]
  %v1237 = vld [vmem:[%s9 + $0x60] sm:$0xf]
  %v1238 = vld [vmem:[%s9 + $0x64] sm:$0xf]
  %v1239 = vld [vmem:[%s9 + $0x68] sm:$0xf]
  %v1240 = vld [vmem:[%s9 + $0x6c] sm:$0xf]
  %v1241 = vld [vmem:[%s9 + $0x70] sm:$0xf]
  %v1242 = vld [vmem:[%s9 + $0x74] sm:$0xf]
  %v1243 = vld [vmem:[%s9 + $0x78] sm:$0xf]
  %v1244 = vld [vmem:[%s9 + $0x7c] sm:$0xf]
  %v1245 = vld [vmem:[%s9 + $0x80] sm:$0xf]
  %v1246 = vld [vmem:[%s9 + $0x84] sm:$0xf]
  %v1247 = vld [vmem:[%s9 + $0x88] sm:$0xf]
  %v1248 = vld [vmem:[%s9 + $0x8c] sm:$0xf]
  %v1249 = vld [vmem:[%s9 + $0x90] sm:$0xf]
  %v1250 = vld [vmem:[%s9 + $0x94] sm:$0xf]
  %v1251 = vld [vmem:[%s9 + $0x98] sm:$0xf]
  %v1252 = vld [vmem:[%s9 + $0x9c] sm:$0xf]
  %v1253 = vld [vmem:[%s9 + $0xa0] sm:$0xf]
  %v1254 = vld [vmem:[%s9 + $0xa4] sm:$0xf]
  %v1255 = vld [vmem:[%s9 + $0xa8] sm:$0xf]
  %v1256 = vld [vmem:[%s9 + $0xac] sm:$0xf]
  %v1257 = vld [vmem:[%s9 + $0xb0] sm:$0xf]
  %v1258 = vld [vmem:[%s9 + $0xb4] sm:$0xf]
  %v1259 = vld [vmem:[%s9 + $0xb8] sm:$0xf]
  %v1260 = vld [vmem:[%s9 + $0xbc] sm:$0xf]
  %v1261 = vld [vmem:[%s9 + $0xc0] sm:$0xf]
  %v1262 = vld [vmem:[%s9 + $0xc4] sm:$0xf]
  %v1263 = vld [vmem:[%s9 + $0xc8] sm:$0xf]
  %v1264 = vld [vmem:[%s9 + $0xcc] sm:$0xf]
  %v1265 = vld [vmem:[%s9 + $0xd0] sm:$0xf]
  %v1266 = vld [vmem:[%s9 + $0xd4] sm:$0xf]
  %v1267 = vld [vmem:[%s9 + $0xd8] sm:$0xf]
  %v1268 = vld [vmem:[%s9 + $0xdc] sm:$0xf]
  %v1269 = vld [vmem:[%s9 + $0xe0] sm:$0xf]
  %v1270 = vld [vmem:[%s9 + $0xe4] sm:$0xf]
  %v1271 = vld [vmem:[%s9 + $0xe8] sm:$0xf]
  %v1272 = vld [vmem:[%s9 + $0xec] sm:$0xf]
  %v1273 = vld [vmem:[%s9 + $0xf0] sm:$0xf]
  %v1274 = vld [vmem:[%s9 + $0xf4] sm:$0xf]
  %v1275 = vld [vmem:[%s9 + $0xf8] sm:$0xf]
  %v1276 = vld [vmem:[%s9 + $0xfc] sm:$0xf]
  %v1277 = vld [vmem:[%s9 + $0x100] sm:$0xf]
  %v1278 = vld [vmem:[%s9 + $0x104] sm:$0xf]
  %v1279 = vld [vmem:[%s9 + $0x108] sm:$0xf]
  %v1280 = vld [vmem:[%s9 + $0x10c] sm:$0xf]
  %v1281 = vld [vmem:[%s9 + $0x110] sm:$0xf]
  %v1282 = vld [vmem:[%s9 + $0x114] sm:$0xf]
  %v1283 = vld [vmem:[%s9 + $0x118] sm:$0xf]
  %v1284 = vld [vmem:[%s9 + $0x11c] sm:$0xf]
  %v1285 = vld [vmem:[%s9 + $0x120] sm:$0xf]
  %v1286 = vld [vmem:[%s9 + $0x124] sm:$0xf]
  %v1287 = vld [vmem:[%s9 + $0x128] sm:$0xf]
  %v1288 = vld [vmem:[%s9 + $0x12c] sm:$0xf]
  %v1289 = vld [vmem:[%s9 + $0x130] sm:$0xf]
  %v1290 = vld [vmem:[%s9 + $0x134] sm:$0xf]
  %v1291 = vld [vmem:[%s9 + $0x138] sm:$0xf]
  %v1292 = vld [vmem:[%s9 + $0x13c] sm:$0xf]
  %v1293 = vld [vmem:[%s9 + $0x140] sm:$0xf]
  %v1294 = vld [vmem:[%s9 + $0x144] sm:$0xf]
  %v1295 = vld [vmem:[%s9 + $0x148] sm:$0xf]
  %v1296 = vld [vmem:[%s9 + $0x14c] sm:$0xf]
  %v1297 = vld [vmem:[%s9 + $0x150] sm:$0xf]
  %v1298 = vld [vmem:[%s9 + $0x154] sm:$0xf]
  %v1299 = vld [vmem:[%s9 + $0x158] sm:$0xf]
  %v1300 = vld [vmem:[%s9 + $0x15c] sm:$0xf]
  %v1301 = vld [vmem:[%s9 + $0x160] sm:$0xf]
  %v1302 = vld [vmem:[%s9 + $0x164] sm:$0xf]
  %v1303 = vld [vmem:[%s9 + $0x168] sm:$0xf]
  %v1304 = vld [vmem:[%s9 + $0x16c] sm:$0xf]
  %v1305 = vld [vmem:[%s9 + $0x170] sm:$0xf]
  %v1306 = vld [vmem:[%s9 + $0x174] sm:$0xf]
  %v1307 = vld [vmem:[%s9 + $0x178] sm:$0xf]
  %v1308 = vld [vmem:[%s9 + $0x17c] sm:$0xf]
  %v1309 = vld [vmem:[%s10] sm:$0x1]
  %v1311 = vperm.slane %v1309, 0
  %v1409 = vunpack.c.l.b16 %v1213
  %v1410 = vunpack.c.l.b16 %v1214
  %v1411 = vunpack.c.l.b16 %v1215
  %v1412 = vunpack.c.l.b16 %v1216
  %v1413 = vunpack.c.l.b16 %v1217
  %v1414 = vunpack.c.l.b16 %v1218
  %v1415 = vunpack.c.l.b16 %v1219
  %v1416 = vunpack.c.l.b16 %v1220
  %v1417 = vunpack.c.l.b16 %v1221
  %v1418 = vunpack.c.l.b16 %v1222
  %v1419 = vunpack.c.l.b16 %v1223
  %v1420 = vunpack.c.l.b16 %v1224
  %v1421 = vunpack.c.l.b16 %v1225
  %v1422 = vunpack.c.l.b16 %v1226
  %v1423 = vunpack.c.l.b16 %v1227
  %v1424 = vunpack.c.l.b16 %v1228
  %v1425 = vunpack.c.l.b16 %v1229
  %v1426 = vunpack.c.l.b16 %v1230
  %v1427 = vunpack.c.l.b16 %v1231
  %v1428 = vunpack.c.l.b16 %v1232
  %v1429 = vunpack.c.l.b16 %v1233
  %v1430 = vunpack.c.l.b16 %v1234
  %v1431 = vunpack.c.l.b16 %v1235
  %v1432 = vunpack.c.l.b16 %v1236
  %v1433 = vunpack.c.l.b16 %v1237
  %v1434 = vunpack.c.l.b16 %v1238
  %v1435 = vunpack.c.l.b16 %v1239
  %v1436 = vunpack.c.l.b16 %v1240
  %v1437 = vunpack.c.l.b16 %v1241
  %v1438 = vunpack.c.l.b16 %v1242
  %v1439 = vunpack.c.l.b16 %v1243
  %v1440 = vunpack.c.l.b16 %v1244
  %v1441 = vunpack.c.l.b16 %v1245
  %v1442 = vunpack.c.l.b16 %v1246
  %v1443 = vunpack.c.l.b16 %v1247
  %v1444 = vunpack.c.l.b16 %v1248
  %v1445 = vunpack.c.l.b16 %v1249
  %v1446 = vunpack.c.l.b16 %v1250
  %v1447 = vunpack.c.l.b16 %v1251
  %v1448 = vunpack.c.l.b16 %v1252
  %v1449 = vunpack.c.l.b16 %v1253
  %v1450 = vunpack.c.l.b16 %v1254
  %v1451 = vunpack.c.l.b16 %v1255
  %v1452 = vunpack.c.l.b16 %v1256
  %v1453 = vunpack.c.l.b16 %v1257
  %v1454 = vunpack.c.l.b16 %v1258
  %v1455 = vunpack.c.l.b16 %v1259
  %v1456 = vunpack.c.l.b16 %v1260
  %v1457 = vunpack.c.l.b16 %v1261
  %v1458 = vunpack.c.l.b16 %v1262
  %v1459 = vunpack.c.l.b16 %v1263
  %v1460 = vunpack.c.l.b16 %v1264
  %v1461 = vunpack.c.l.b16 %v1265
  %v1462 = vunpack.c.l.b16 %v1266
  %v1463 = vunpack.c.l.b16 %v1267
  %v1464 = vunpack.c.l.b16 %v1268
  %v1465 = vunpack.c.l.b16 %v1269
  %v1466 = vunpack.c.l.b16 %v1270
  %v1467 = vunpack.c.l.b16 %v1271
  %v1468 = vunpack.c.l.b16 %v1272
  %v1469 = vunpack.c.l.b16 %v1273
  %v1470 = vunpack.c.l.b16 %v1274
  %v1471 = vunpack.c.l.b16 %v1275
  %v1472 = vunpack.c.l.b16 %v1276
  %v1473 = vunpack.c.l.b16 %v1277
  %v1474 = vunpack.c.l.b16 %v1278
  %v1475 = vunpack.c.l.b16 %v1279
  %v1476 = vunpack.c.l.b16 %v1280
  %v1477 = vunpack.c.l.b16 %v1281
  %v1478 = vunpack.c.l.b16 %v1282
  %v1479 = vunpack.c.l.b16 %v1283
  %v1480 = vunpack.c.l.b16 %v1284
  %v1481 = vunpack.c.l.b16 %v1285
  %v1482 = vunpack.c.l.b16 %v1286
  %v1483 = vunpack.c.l.b16 %v1287
  %v1484 = vunpack.c.l.b16 %v1288
  %v1485 = vunpack.c.l.b16 %v1289
  %v1486 = vunpack.c.l.b16 %v1290
  %v1487 = vunpack.c.l.b16 %v1291
  %v1488 = vunpack.c.l.b16 %v1292
  %v1489 = vunpack.c.l.b16 %v1293
  %v1490 = vunpack.c.l.b16 %v1294
  %v1491 = vunpack.c.l.b16 %v1295
  %v1492 = vunpack.c.l.b16 %v1296
  %v1493 = vunpack.c.l.b16 %v1297
  %v1494 = vunpack.c.l.b16 %v1298
  %v1495 = vunpack.c.l.b16 %v1299
  %v1496 = vunpack.c.l.b16 %v1300
  %v1497 = vunpack.c.l.b16 %v1301
  %v1498 = vunpack.c.l.b16 %v1302
  %v1499 = vunpack.c.l.b16 %v1303
  %v1500 = vunpack.c.l.b16 %v1304
  %v1501 = vunpack.c.l.b16 %v1305
  %v1502 = vunpack.c.l.b16 %v1306
  %v1503 = vunpack.c.l.b16 %v1307
  %v1504 = vunpack.c.l.b16 %v1308
  %v1505 = vpack.c.b16 %v1410, %v1409
  %v1506 = vpack.c.b16 %v1412, %v1411
  %v1507 = vpack.c.b16 %v1414, %v1413
  %v1508 = vpack.c.b16 %v1416, %v1415
  %v1509 = vpack.c.b16 %v1418, %v1417
  %v1510 = vpack.c.b16 %v1420, %v1419
  %v1511 = vpack.c.b16 %v1422, %v1421
  %v1512 = vpack.c.b16 %v1424, %v1423
  %v1513 = vpack.c.b16 %v1426, %v1425
  %v1514 = vpack.c.b16 %v1428, %v1427
  %v1515 = vpack.c.b16 %v1430, %v1429
  %v1516 = vpack.c.b16 %v1432, %v1431
  %v1517 = vpack.c.b16 %v1434, %v1433
  %v1518 = vpack.c.b16 %v1436, %v1435
  %v1519 = vpack.c.b16 %v1438, %v1437
  %v1520 = vpack.c.b16 %v1440, %v1439
  %v1521 = vpack.c.b16 %v1442, %v1441
  %v1522 = vpack.c.b16 %v1444, %v1443
  %v1523 = vpack.c.b16 %v1446, %v1445
  %v1524 = vpack.c.b16 %v1448, %v1447
  %v1525 = vpack.c.b16 %v1450, %v1449
  %v1526 = vpack.c.b16 %v1452, %v1451
  %v1527 = vpack.c.b16 %v1454, %v1453
  %v1528 = vpack.c.b16 %v1456, %v1455
  %v1529 = vpack.c.b16 %v1458, %v1457
  %v1530 = vpack.c.b16 %v1460, %v1459
  %v1531 = vpack.c.b16 %v1462, %v1461
  %v1532 = vpack.c.b16 %v1464, %v1463
  %v1533 = vpack.c.b16 %v1466, %v1465
  %v1534 = vpack.c.b16 %v1468, %v1467
  %v1535 = vpack.c.b16 %v1470, %v1469
  %v1536 = vpack.c.b16 %v1472, %v1471
  %v1537 = vpack.c.b16 %v1474, %v1473
  %v1538 = vpack.c.b16 %v1476, %v1475
  %v1539 = vpack.c.b16 %v1478, %v1477
  %v1540 = vpack.c.b16 %v1480, %v1479
  %v1541 = vpack.c.b16 %v1482, %v1481
  %v1542 = vpack.c.b16 %v1484, %v1483
  %v1543 = vpack.c.b16 %v1486, %v1485
  %v1544 = vpack.c.b16 %v1488, %v1487
  %v1545 = vpack.c.b16 %v1490, %v1489
  %v1546 = vpack.c.b16 %v1492, %v1491
  %v1547 = vpack.c.b16 %v1494, %v1493
  %v1548 = vpack.c.b16 %v1496, %v1495
  %v1549 = vpack.c.b16 %v1498, %v1497
  %v1550 = vpack.c.b16 %v1500, %v1499
  %v1551 = vpack.c.b16 %v1502, %v1501
  %v1552 = vpack.c.b16 %v1504, %v1503
  %1601 = vmatpush.bf16.msra.mxu0 %v1512
  %1602 = vmatpush.bf16.msra.mxu0 %v1511
  %1603 = vmatpush.bf16.msra.mxu0 %v1510
  %1604 = vmatpush.bf16.msra.mxu0 %v1509
  %1605 = vmatpush.bf16.msra.mxu0 %v1508
  %1606 = vmatpush.bf16.msra.mxu0 %v1507
  %1607 = vmatpush.bf16.msra.mxu0 %v1506
  %1608 = vmatpush.bf16.msra.mxu0 %v1505
  %1609 = vmatmul.bf16.gmra.mxu0 %v1166
  %v1610 = vpop.f32.mrf.mxu0
  %v1611 = vadd.f32 %v1311, %v1610
  %v1612 = vpop.f32.mrf.mxu0
  %v1613 = vadd.f32 %v1311, %v1612
  %1614 = vmatmul.bf16.gmra.mxu0 %v1172
  %v1615 = vpop.f32.mrf.mxu0
  %v1616 = vadd.f32 %v1311, %v1615
  %v1617 = vpop.f32.mrf.mxu0
  %v1618 = vadd.f32 %v1311, %v1617
  %1619 = vdwg.mxu0
  %1620 = vmatpush.bf16.msra.mxu0 %v1520
  %1621 = vmatpush.bf16.msra.mxu0 %v1519
  %1622 = vmatpush.bf16.msra.mxu0 %v1518
  %1623 = vmatpush.bf16.msra.mxu0 %v1517
  %1624 = vmatpush.bf16.msra.mxu0 %v1516
  %1625 = vmatpush.bf16.msra.mxu0 %v1515
  %1626 = vmatpush.bf16.msra.mxu0 %v1514
  %1627 = vmatpush.bf16.msra.mxu0 %v1513
  %1628 = vmatmul.bf16.gmra.mxu0 %v1169
  %v1629 = vpop.f32.mrf.mxu0
  %v1630 = vadd.f32 %v1611, %v1629
  %v1631 = vpop.f32.mrf.mxu0
  %v1632 = vadd.f32 %v1613, %v1631
  %1633 = vmatmul.bf16.gmra.mxu0 %v1175
  %v1634 = vpop.f32.mrf.mxu0
  %v1635 = vadd.f32 %v1616, %v1634
  %v1636 = vpop.f32.mrf.mxu0
  %v1637 = vadd.f32 %v1618, %v1636
  %1638 = vdwg.mxu0
  %1639 = vmatpush.bf16.msra.mxu0 %v1528
  %1640 = vmatpush.bf16.msra.mxu0 %v1527
  %1641 = vmatpush.bf16.msra.mxu0 %v1526
  %1642 = vmatpush.bf16.msra.mxu0 %v1525
  %1643 = vmatpush.bf16.msra.mxu0 %v1524
  %1644 = vmatpush.bf16.msra.mxu0 %v1523
  %1645 = vmatpush.bf16.msra.mxu0 %v1522
  %1646 = vmatpush.bf16.msra.mxu0 %v1521
  %1647 = vmatmul.bf16.gmra.mxu0 %v1199
  %v1648 = vpop.f32.mrf.mxu0
  %v1649 = vadd.f32 %v1630, %v1648
  %v1650 = vpop.f32.mrf.mxu0
  %v1651 = vadd.f32 %v1632, %v1650
  %1652 = vmatmul.bf16.gmra.mxu0 %v1205
  %v1653 = vpop.f32.mrf.mxu0
  %v1654 = vadd.f32 %v1635, %v1653
  %v1655 = vpop.f32.mrf.mxu0
  %v1656 = vadd.f32 %v1637, %v1655
  %1657 = vdwg.mxu0
  %1658 = vmatpush.bf16.msra.mxu0 %v1536
  %1659 = vmatpush.bf16.msra.mxu0 %v1535
  %1660 = vmatpush.bf16.msra.mxu0 %v1534
  %1661 = vmatpush.bf16.msra.mxu0 %v1533
  %1662 = vmatpush.bf16.msra.mxu0 %v1532
  %1663 = vmatpush.bf16.msra.mxu0 %v1531
  %1664 = vmatpush.bf16.msra.mxu0 %v1530
  %1665 = vmatpush.bf16.msra.mxu0 %v1529
  %1666 = vmatmul.bf16.gmra.mxu0 %v1202
  %v1667 = vpop.f32.mrf.mxu0
  %v1668 = vadd.f32 %v1649, %v1667
  %v1669 = vpop.f32.mrf.mxu0
  %v1670 = vadd.f32 %v1651, %v1669
  %1671 = vmatmul.bf16.gmra.mxu0 %v1208
  %v1672 = vpop.f32.mrf.mxu0
  %v1673 = vadd.f32 %v1654, %v1672
  %v1674 = vpop.f32.mrf.mxu0
  %v1675 = vadd.f32 %v1656, %v1674
  %1676 = vdwg.mxu0
  %1677 = vmatpush.bf16.msra.mxu0 %v1544
  %1678 = vmatpush.bf16.msra.mxu0 %v1543
  %1679 = vmatpush.bf16.msra.mxu0 %v1542
  %1680 = vmatpush.bf16.msra.mxu0 %v1541
  %1681 = vmatpush.bf16.msra.mxu0 %v1540
  %1682 = vmatpush.bf16.msra.mxu0 %v1539
  %1683 = vmatpush.bf16.msra.mxu0 %v1538
  %1684 = vmatpush.bf16.msra.mxu0 %v1537
  %1685 = vmatmul.bf16.gmra.mxu0 %v1178
  %v1686 = vpop.f32.mrf.mxu0
  %v1687 = vadd.f32 %v1668, %v1686
  %v1688 = vpop.f32.mrf.mxu0
  %v1689 = vadd.f32 %v1670, %v1688
  %1690 = vmatmul.bf16.gmra.mxu0 %v1184
  %v1691 = vpop.f32.mrf.mxu0
  %v1692 = vadd.f32 %v1673, %v1691
  %v1693 = vpop.f32.mrf.mxu0
  %v1694 = vadd.f32 %v1675, %v1693
  %1695 = vdwg.mxu0
  %1696 = vmatpush.bf16.msra.mxu0 %v1552
  %1697 = vmatpush.bf16.msra.mxu0 %v1551
  %1698 = vmatpush.bf16.msra.mxu0 %v1550
  %1699 = vmatpush.bf16.msra.mxu0 %v1549
  %1700 = vmatpush.bf16.msra.mxu0 %v1548
  %1701 = vmatpush.bf16.msra.mxu0 %v1547
  %1702 = vmatpush.bf16.msra.mxu0 %v1546
  %1703 = vmatpush.bf16.msra.mxu0 %v1545
  %1704 = vmatmul.bf16.gmra.mxu0 %v1181
  %v1705 = vpop.f32.mrf.mxu0
  %v1706 = vadd.f32 %v1687, %v1705
  %v1707 = vpop.f32.mrf.mxu0
  %v1708 = vadd.f32 %v1689, %v1707
  %1709 = vmatmul.bf16.gmra.mxu0 %v1187
  %v1710 = vpop.f32.mrf.mxu0
  %v1711 = vadd.f32 %v1692, %v1710
  %v1712 = vpop.f32.mrf.mxu0
  %v1713 = vadd.f32 %v1694, %v1712
  %1714 = vdwg.mxu0
  %v1715 = vpack.c.bf16 %v1706, %v1706
  %v1716 = vpack.c.bf16 %v1708, %v1708
  %v1717 = vpack.c.bf16 %v1711, %v1711
  %v1718 = vpack.c.bf16 %v1713, %v1713
  %1719 = vst [vmem:[%s174] sm:$0xf] %v1715
  %1720 = vst [vmem:[%s174 + $0x4] sm:$0xf] %v1716
  %1721 = vst [vmem:[%s174 + $0x8] sm:$0xf] %v1717
  %1722 = vst [vmem:[%s174 + $0xc] sm:$0xf] %v1718
  %v1723 = vadd.f32 %v1706, %v1708
  %v1724 = vadd.f32 %v1723, %v1711
  %v1725 = vadd.f32 %v1724, %v1713
  %v1726 = vrot.slane %v1725, 4
  %v1727 = vadd.f32 %v1725, %v1726
  %v1728 = vrot.slane %v1727, 2
  %v1729 = vadd.f32 %v1727, %v1728
  %v1730 = vrot.slane %v1729, 1
  %v1731 = vadd.f32 %v1729, %v1730
  %v1732 = vadd.f32 %v1731, 0.0
  %v1733 = vmul.f32 %v1706, %v1706
  %v1734 = vmul.f32 %v1708, %v1708
  %v1735 = vmul.f32 %v1711, %v1711
  %v1736 = vmul.f32 %v1713, %v1713
  %v1737 = vadd.f32 %v1733, %v1734
  %v1738 = vadd.f32 %v1737, %v1735
  %v1739 = vadd.f32 %v1738, %v1736
  %v1740 = vrot.slane %v1739, 4
  %v1741 = vadd.f32 %v1739, %v1740
  %v1742 = vrot.slane %v1741, 2
  %v1743 = vadd.f32 %v1741, %v1742
  %v1744 = vrot.slane %v1743, 1
  %v1745 = vadd.f32 %v1743, %v1744
  %v1746 = vadd.f32 %v1745, 0.0
  %v1747 = vld [vmem:[%s11] sm:$0x1]
  %v1748 = vld [vmem:[%s12] sm:$0x1]
  %v1749 = vmul.f32 %v1732, 0.03125
  %v1750 = vmul.f32 %v1746, 0.03125
  %v1751 = vmul.f32 %v1749, %v1749
  %v1752 = vsub.f32 %v1750, %v1751
  %v1753 = vmax.f32 %v1752, 0.0
  %v1754 = vadd.f32 %v1753, 1e-05
  %v1755 = vrsqrt.pop %v1754
  %v1756 = vmul.f32 %v1755, %v1754
  %v1757 = vmul.f32 %v1756, %v1755
  %v1758 = vmul.f32 0.5, %v1757
  %v1759 = vsub.f32 1.5, %v1758
  %v1760 = vmul.f32 %v1755, %v1759
  %vm1761 = vweird.f32 %v1754
  %vm1762 = vweird.f32 %v1755
  %vm1763 = vmor %vm1761, %vm1762
  %v1764 = vsel %vm1763, %v1755, %v1760
  %v1765 = vmul.f32 %v1747, %v1764
  %v1766 = vmul.f32 %v1749, %v1765
  %v1767 = vsub.f32 %v1748, %v1766
  %v1768 = vld [vmem:[%s174] sm:$0xf]
  %v1769 = vld [vmem:[%s174 + $0x4] sm:$0xf]
  %v1770 = vld [vmem:[%s174 + $0x8] sm:$0xf]
  %v1771 = vld [vmem:[%s174 + $0xc] sm:$0xf]
  %v1772 = vunpack.c.l.bf16 %v1768
  %v1773 = vunpack.c.l.bf16 %v1769
  %v1774 = vunpack.c.l.bf16 %v1770
  %v1775 = vunpack.c.l.bf16 %v1771
  %v1777 = vperm.slane %v1765, 0
  %v1779 = vmul.f32 %v1772, %v1777
  %v1780 = vmul.f32 %v1773, %v1777
  %v1781 = vmul.f32 %v1774, %v1777
  %v1782 = vmul.f32 %v1775, %v1777
  %v1784 = vperm.slane %v1767, 0
  %v1786 = vadd.f32 %v1779, %v1784
  %v1787 = vadd.f32 %v1780, %v1784
  %v1788 = vadd.f32 %v1781, %v1784
  %v1789 = vadd.f32 %v1782, %v1784
  %v1790 = vmax.f32 %v1786, 0.0
  %v1791 = vmax.f32 %v1787, 0.0
  %v1792 = vmax.f32 %v1788, 0.0
  %v1793 = vmax.f32 %v1789, 0.0
  %v1794 = vadd.f32 %v1790, %v1791
  %v1795 = vrot.slane %v1794, 4
  %v1796 = vadd.f32 %v1794, %v1795
  %v1797 = vrot.slane %v1796, 2
  %v1798 = vadd.f32 %v1796, %v1797
  %v1799 = vrot.slane %v1798, 1
  %v1800 = vadd.f32 %v1798, %v1799
  %v1801 = vadd.f32 %v1792, %v1793
  %v1802 = vrot.slane %v1801, 4
  %v1803 = vadd.f32 %v1801, %v1802
  %v1804 = vrot.slane %v1803, 2
  %v1805 = vadd.f32 %v1803, %v1804
  %v1806 = vrot.slane %v1805, 1
  %v1807 = vadd.f32 %v1805, %v1806
  %v1808 = vrcp.pop 16.0
  %v1809 = vmul.f32 16.0, %v1808
  %v1810 = vsub.f32 1.0, %v1809
  %v1811 = vmul.f32 %v1808, %v1810
  %v1812 = vadd.f32 %v1808, %v1811
  %vm1813 = vweird.f32 %v1808
  %v1814 = vsel %vm1813, %v1808, %v1812
  %v1815 = vmul.f32 %v1800, %v1814
  %v1816 = vmul.f32 %v1807, %v1814
  %vm1819 = vcmask 1041409
  %v1820 = vsel %vm1819, %v1816, %v1815
  %1822 = vst [vmem:[#allocation4] sm:$0x3] %v1820
  %v1823 = vld [vmem:[#allocation4] sm:$0x3]
  %v1824 = vld [vmem:[%s13] sm:$0xff]
  %v1825 = vld [vmem:[%s13 + $0x8] sm:$0xff]
  %v1826 = vld [vmem:[%s13 + $0x10] sm:$0xff]
  %v1827 = vld [vmem:[%s13 + $0x18] sm:$0xff]
  %v1828 = vld [vmem:[%s13 + $0x20] sm:$0xff]
  %v1829 = vld [vmem:[%s13 + $0x28] sm:$0xff]
  %v1830 = vld [vmem:[%s13 + $0x30] sm:$0xff]
  %v1831 = vld [vmem:[%s13 + $0x38] sm:$0xff]
  %v1832 = vld [vmem:[%s13 + $0x40] sm:$0xff]
  %v1833 = vld [vmem:[%s13 + $0x48] sm:$0xff]
  %v1834 = vld [vmem:[%s13 + $0x50] sm:$0xff]
  %v1835 = vld [vmem:[%s13 + $0x58] sm:$0xff]
  %v1836 = vld [vmem:[%s13 + $0x60] sm:$0xff]
  %v1837 = vld [vmem:[%s13 + $0x68] sm:$0xff]
  %v1838 = vld [vmem:[%s13 + $0x70] sm:$0xff]
  %v1839 = vld [vmem:[%s13 + $0x78] sm:$0xff]
  %v1840 = vld [vmem:[%s14] sm:$0x1]
  %v1842 = vperm.slane %v1840, 0
  %1844 = vmatpush.msra.mxu0 %v1839
  %1845 = vmatpush.msra.mxu0 %v1838
  %1846 = vmatpush.msra.mxu0 %v1837
  %1847 = vmatpush.msra.mxu0 %v1836
  %1848 = vmatpush.msra.mxu0 %v1835
  %1849 = vmatpush.msra.mxu0 %v1834
  %1850 = vmatpush.msra.mxu0 %v1833
  %1851 = vmatpush.msra.mxu0 %v1832
  %1852 = vmatpush.msra.mxu0 %v1831
  %1853 = vmatpush.msra.mxu0 %v1830
  %1854 = vmatpush.msra.mxu0 %v1829
  %1855 = vmatpush.msra.mxu0 %v1828
  %1856 = vmatpush.msra.mxu0 %v1827
  %1857 = vmatpush.msra.mxu0 %v1826
  %1858 = vmatpush.msra.mxu0 %v1825
  %1859 = vmatpush.msra.mxu0 %v1824
  %1860 = vmatmul.f32.gmra.mxu0 %v1823
  %v1861 = vpop.f32.mrf.mxu0
  %v1862 = vadd.f32 %v1842, %v1861
  %1863 = vdwg.mxu0
  %vm1864 = vcmask 1041408
  %v1865 = vsel %vm1864, %v1862, 0.0
  %v1866 = vrot.slane %v1865, 4
  %v1867 = vadd.f32 %v1865, %v1866
  %v1868 = vrot.slane %v1867, 2
  %v1869 = vadd.f32 %v1867, %v1868
  %v1870 = vrot.slane %v1869, 1
  %v1871 = vadd.f32 %v1869, %v1870
  %v1872 = vrcp.pop 2.0
  %v1873 = vmul.f32 2.0, %v1872
  %v1874 = vsub.f32 1.0, %v1873
  %v1875 = vmul.f32 %v1872, %v1874
  %v1876 = vadd.f32 %v1872, %v1875
  %vm1877 = vweird.f32 %v1872
  %v1878 = vsel %vm1877, %v1872, %v1876
  %v1879 = vmul.f32 %v1871, %v1878
  %v1880 = vsub.f32 %v1862, %v1879
  %v1881 = vmul.f32 %v1880, %v1880
  %v1882 = vsel %vm1864, %v1881, 0.0
  %v1883 = vrot.slane %v1882, 4
  %v1884 = vadd.f32 %v1882, %v1883
  %v1885 = vrot.slane %v1884, 2
  %v1886 = vadd.f32 %v1884, %v1885
  %v1887 = vrot.slane %v1886, 1
  %v1888 = vadd.f32 %v1886, %v1887
  %v1889 = vmul.f32 %v1888, %v1878
  %v1890 = vld [vmem:[%s15] sm:$0x1]
  %v1891 = vadd.f32 %v1889, 1e-05
  %v1892 = vrsqrt.pop %v1891
  %v1893 = vmul.f32 %v1892, %v1891
  %v1894 = vmul.f32 %v1893, %v1892
  %v1895 = vmul.f32 0.5, %v1894
  %v1896 = vsub.f32 1.5, %v1895
  %v1897 = vmul.f32 %v1892, %v1896
  %vm1898 = vweird.f32 %v1891
  %vm1899 = vweird.f32 %v1892
  %vm1900 = vmor %vm1898, %vm1899
  %v1901 = vsel %vm1900, %v1892, %v1897
  %v1902 = vmul.f32 %v1890, %v1901
  %v1904 = vperm.slane %v1902, 0
  %v1906 = vmul.f32 %v1880, %v1904
  %v1907 = vld [vmem:[%s16] sm:$0x1]
  %v1909 = vperm.slane %v1907, 0
  %v1911 = vadd.f32 %v1906, %v1909
  %v1912 = vmax.f32 %v1911, 0.0
  %v1913 = vld [vmem:[%s17] sm:$0xff]
  %v1914 = vld [vmem:[%s17 + $0x8] sm:$0xff]
  %v1915 = vld [vmem:[%s17 + $0x10] sm:$0xff]
  %v1916 = vld [vmem:[%s17 + $0x18] sm:$0xff]
  %v1917 = vld [vmem:[%s17 + $0x20] sm:$0xff]
  %v1918 = vld [vmem:[%s17 + $0x28] sm:$0xff]
  %v1919 = vld [vmem:[%s17 + $0x30] sm:$0xff]
  %v1920 = vld [vmem:[%s17 + $0x38] sm:$0xff]
  %v1921 = vld [vmem:[%s17 + $0x40] sm:$0xff]
  %v1922 = vld [vmem:[%s17 + $0x48] sm:$0xff]
  %v1923 = vld [vmem:[%s17 + $0x50] sm:$0xff]
  %v1924 = vld [vmem:[%s17 + $0x58] sm:$0xff]
  %v1925 = vld [vmem:[%s17 + $0x60] sm:$0xff]
  %v1926 = vld [vmem:[%s17 + $0x68] sm:$0xff]
  %v1927 = vld [vmem:[%s17 + $0x70] sm:$0xff]
  %v1928 = vld [vmem:[%s17 + $0x78] sm:$0xff]
  %v1929 = vld [vmem:[%s18] sm:$0x1]
  %v1931 = vperm.slane %v1929, 0
  %1933 = vmatpush.msra.mxu0 %v1928
  %1934 = vmatpush.msra.mxu0 %v1927
  %1935 = vmatpush.msra.mxu0 %v1926
  %1936 = vmatpush.msra.mxu0 %v1925
  %1937 = vmatpush.msra.mxu0 %v1924
  %1938 = vmatpush.msra.mxu0 %v1923
  %1939 = vmatpush.msra.mxu0 %v1922
  %1940 = vmatpush.msra.mxu0 %v1921
  %1941 = vmatpush.msra.mxu0 %v1920
  %1942 = vmatpush.msra.mxu0 %v1919
  %1943 = vmatpush.msra.mxu0 %v1918
  %1944 = vmatpush.msra.mxu0 %v1917
  %1945 = vmatpush.msra.mxu0 %v1916
  %1946 = vmatpush.msra.mxu0 %v1915
  %1947 = vmatpush.msra.mxu0 %v1914
  %1948 = vmatpush.msra.mxu0 %v1913
  %1949 = vmatmul.f32.gmra.mxu0 %v1912
  %v1950 = vpop.f32.mrf.mxu0
  %v1951 = vadd.f32 %v1931, %v1950
  %1952 = vdwg.mxu0
  %v1955 = vrot.slane %v1823, 6
  %v1956 = vsel %vm1864, %v1951, %v1955
  %1958 = vst [vmem:[%s19] sm:$0xf] %v1956
  // Predicated region
  $region78: #{fcn_forward.1} parent=0 // pred_check
    _
  $region79: #{fcn_forward.1} parent=0 // pred_check_branch
    %1960 = sbr.rel (0) target = $region81
  $region80: #{fcn_forward.1} parent=0 // pred_region
    _
  $region81: #{fcn_forward.1} parent=0 // pred_fallthru
    _
  // Predicated region
  $region82: #{fcn_forward.1} parent=0 // pred_check
    _
  $region83: #{fcn_forward.1} parent=0 // pred_check_branch
    %1962 = sbr.rel (0) target = $region85
  $region84: #{fcn_forward.1} parent=0 // pred_region
    _
  $region85: #{fcn_forward.1} parent=0 // pred_fallthru
    _

</llo_original>
